<compile_context>
chip_gen: v7x
topology: tpu7x:2x2x1
jax: 0.10.0
libtpu: 0.0.40
codegen_flags: <defaults>
</compile_context>

<pallas_src>
import math

import jax
import jax.numpy as jnp
from jax.experimental import pallas as pl
from jax.experimental.pallas import tpu as pltpu


# ----------------------------------------------------------------------------
# Pallas kernels
# ----------------------------------------------------------------------------
def _matmul_scale_bias_relu_kernel(a_ref, w_ref, s_ref, b_ref, o_ref):
    acc = jnp.dot(a_ref[...], w_ref[...], preferred_element_type=jnp.float32)
    acc = acc * s_ref[...] + b_ref[...]
    o_ref[...] = jnp.maximum(acc, 0.0).astype(o_ref.dtype)


def _matmul_scale_bias_kernel(a_ref, w_ref, s_ref, b_ref, o_ref):
    acc = jnp.dot(a_ref[...], w_ref[...], preferred_element_type=jnp.float32)
    o_ref[...] = (acc * s_ref[...] + b_ref[...]).astype(o_ref.dtype)


def _dwconv3x3_s1_kernel(x_ref, w_ref, s_ref, b_ref, o_ref):
    # x_ref block: (1, H+2, W+2, C) zero-padded input; o_ref block: (1, H, W, C)
    x = x_ref[0]
    Ho, Wo, C = o_ref.shape[1], o_ref.shape[2], o_ref.shape[3]
    w = w_ref[...]                                      # (9, C) f32
    acc = jnp.zeros((Ho, Wo, C), jnp.float32)
    for k in range(9):
        ky, kx = k // 3, k % 3
        tap = x[ky:ky + Ho, kx:kx + Wo, :].astype(jnp.float32)
        acc = acc + tap * w[k:k + 1, :].reshape(1, 1, C)
    out = acc * s_ref[...].reshape(1, 1, C) + b_ref[...].reshape(1, 1, C)
    o_ref[0] = out.astype(o_ref.dtype)


def _dwconv3x3_s2_kernel(x_ref, w_ref, s_ref, b_ref, o_ref):
    # x_ref block: (1, 4, Ho+1, Wo+1, C) phase-split (space-to-depth) padded
    # input; only the stride-2 output pixels are computed and written.
    Ho, Wo, C = o_ref.shape[1], o_ref.shape[2], o_ref.shape[3]
    ph = [x_ref[0, i] for i in range(4)]                # each (Ho+1, Wo+1, C)
    w = w_ref[...]                                      # (9, C) f32
    acc = jnp.zeros((Ho, Wo, C), jnp.float32)
    for k in range(9):
        ky, kx = k // 3, k % 3
        p = (ky % 2) * 2 + (kx % 2)
        oy, ox = ky // 2, kx // 2
        tap = ph[p][oy:oy + Ho, ox:ox + Wo, :].astype(jnp.float32)
        acc = acc + tap * w[k:k + 1, :].reshape(1, 1, C)
    out = acc * s_ref[...].reshape(1, 1, C) + b_ref[...].reshape(1, 1, C)
    o_ref[0] = out.astype(o_ref.dtype)


def _maxpool3x3_s2_kernel(x_ref, o_ref):
    # x_ref block: (1, 4, Ho+1, Wo+1, C) phase-split (-inf padded) input.
    Ho, Wo = o_ref.shape[1], o_ref.shape[2]
    ph = [x_ref[0, i] for i in range(4)]
    m = ph[0][0:Ho, 0:Wo, :]
    for k in range(1, 9):
        ky, kx = k // 3, k % 3
        p = (ky % 2) * 2 + (kx % 2)
        oy, ox = ky // 2, kx // 2
        m = jnp.maximum(m, ph[p][oy:oy + Ho, ox:ox + Wo, :])
    o_ref[0] = m


def _head_kernel(a_ref, w1_ref, s1_ref, b1_ref, sel_ref, fcw_ref, fcs_ref,
                 fcb_ref, o_ref):
    # Fused: final 1x1 conv + BN + ReLU -> global 7x7 avg-pool -> FC.
    y = jnp.dot(a_ref[...], w1_ref[...], preferred_element_type=jnp.float32)
    y = jnp.maximum(y * s1_ref[...] + b1_ref[...], 0.0)            # (M, Cf)
    pooled = jnp.dot(sel_ref[...], y, preferred_element_type=jnp.float32)  # (B, Cf)
    logits = jnp.dot(pooled, fcw_ref[...], preferred_element_type=jnp.float32)
    o_ref[...] = logits * fcs_ref[...] + fcb_ref[...]


# ----------------------------------------------------------------------------
# Pallas wrappers
# ----------------------------------------------------------------------------
def _pick_tile_m(m, max_tile=1024):
    """Largest multiple-of-8 divisor of m that is <= max_tile (or m itself)."""
    if m <= max_tile:
        return m
    for t in range(max_tile, 7, -8):
        if m % t == 0:
            return t
    return max_tile   # ragged last block; Pallas masks the boundary write


def matmul_scale_bias(a, w, scale, bias, *, relu, out_dtype=jnp.bfloat16):
    """out = act((a @ w) * scale + bias) with per-output-column scale/bias."""
    M, K = a.shape
    N = w.shape[1]
    tile_m = _pick_tile_m(M)
    grid_m = pl.cdiv(M, tile_m)
    kernel = _matmul_scale_bias_relu_kernel if relu else _matmul_scale_bias_kernel
    return pl.pallas_call(
        kernel,
        out_shape=jax.ShapeDtypeStruct((M, N), out_dtype),
        grid=(grid_m,),
        in_specs=[
            pl.BlockSpec((tile_m, K), lambda i: (i, 0)),
            pl.BlockSpec((K, N), lambda i: (0, 0)),
            pl.BlockSpec((1, N), lambda i: (0, 0)),
            pl.BlockSpec((1, N), lambda i: (0, 0)),
        ],
        out_specs=pl.BlockSpec((tile_m, N), lambda i: (i, 0)),
        compiler_params=pltpu.CompilerParams(dimension_semantics=("parallel",)),
    )(a, w, scale.reshape(1, N), bias.reshape(1, N))


def apply_conv1x1_block(x, p, relu=True):
    N, H, W, Cin = x.shape
    Cout = p["w"].shape[1]
    a = x.reshape(N * H * W, Cin)
    out = matmul_scale_bias(a, p["w"], p["scale"], p["bias"], relu=relu)
    return out.reshape(N, H, W, Cout)


def _extract_phases(xp, ho, wo):
    """Space-to-depth: padded (N,Hp,Wp,C) -> (N,4,ho+1,wo+1,C) phase stack."""
    phases = []
    for py in range(2):
        for px in range(2):
            phases.append(xp[:, py::2, px::2, :][:, :ho + 1, :wo + 1, :])
    return jnp.stack(phases, axis=1)


def apply_dwconv3x3_block(x, p, stride):
    # depthwise 3x3, padding=1; BN folded; no activation (ShuffleNet dconv)
    N, H, W, C = x.shape
    w = p["w"]
    s = p["scale"].reshape(1, C)
    b = p["bias"].reshape(1, C)
    if stride == 1:
        xp = jnp.pad(x, ((0, 0), (1, 1), (1, 1), (0, 0)))
        return pl.pallas_call(
            _dwconv3x3_s1_kernel,
            out_shape=jax.ShapeDtypeStruct((N, H, W, C), x.dtype),
            grid=(N,),
            in_specs=[
                pl.BlockSpec((1, H + 2, W + 2, C), lambda n: (n, 0, 0, 0)),
                pl.BlockSpec((9, C), lambda n: (0, 0)),
                pl.BlockSpec((1, C), lambda n: (0, 0)),
                pl.BlockSpec((1, C), lambda n: (0, 0)),
            ],
            out_specs=pl.BlockSpec((1, H, W, C), lambda n: (n, 0, 0, 0)),
            compiler_params=pltpu.CompilerParams(dimension_semantics=("parallel",)),
        )(xp, w, s, b)
    # stride 2: compute only the kept pixels via the phase decomposition
    assert H % 2 == 0 and W % 2 == 0
    Ho, Wo = H // 2, W // 2
    xp = jnp.pad(x, ((0, 0), (1, 1), (1, 1), (0, 0)))
    phases = _extract_phases(xp, Ho, Wo)
    return pl.pallas_call(
        _dwconv3x3_s2_kernel,
        out_shape=jax.ShapeDtypeStruct((N, Ho, Wo, C), x.dtype),
        grid=(N,),
        in_specs=[
            pl.BlockSpec((1, 4, Ho + 1, Wo + 1, C), lambda n: (n, 0, 0, 0, 0)),
            pl.BlockSpec((9, C), lambda n: (0, 0)),
            pl.BlockSpec((1, C), lambda n: (0, 0)),
            pl.BlockSpec((1, C), lambda n: (0, 0)),
        ],
        out_specs=pl.BlockSpec((1, Ho, Wo, C), lambda n: (n, 0, 0, 0)),
        compiler_params=pltpu.CompilerParams(dimension_semantics=("parallel",)),
    )(phases, w, s, b)


def apply_maxpool3x3_s2(x):
    # MaxPool2d(kernel_size=3, stride=2, padding=1, ceil_mode=False)
    N, H, W, C = x.shape
    assert H % 2 == 0 and W % 2 == 0
    Ho, Wo = H // 2, W // 2
    xp = jnp.pad(x, ((0, 0), (1, 1), (1, 1), (0, 0)), constant_values=-jnp.inf)
    phases = _extract_phases(xp, Ho, Wo)
    return pl.pallas_call(
        _maxpool3x3_s2_kernel,
        out_shape=jax.ShapeDtypeStruct((N, Ho, Wo, C), x.dtype),
        grid=(N,),
        in_specs=[pl.BlockSpec((1, 4, Ho + 1, Wo + 1, C), lambda n: (n, 0, 0, 0, 0))],
        out_specs=pl.BlockSpec((1, Ho, Wo, C), lambda n: (n, 0, 0, 0)),
        compiler_params=pltpu.CompilerParams(dimension_semantics=("parallel",)),
    )(phases)


def apply_init_conv3x3_block(x, p):
    # 3x3 conv, stride 2, padding 1 + BN + ReLU, via im2col (glue) + matmul kernel.
    # The strided slices only gather the pixels actually used by the stride-2 conv.
    N, H, W, Cin = x.shape
    Cout = p["w"].shape[-1]
    Ho = (H - 1) // 2 + 1
    Wo = (W - 1) // 2 + 1
    xp = jnp.pad(x, ((0, 0), (1, 1), (1, 1), (0, 0)))
    patches = []
    for ky in range(3):
        for kx in range(3):
            patches.append(xp[:, ky:ky + 2 * Ho:2, kx:kx + 2 * Wo:2, :])
    a = jnp.concatenate(patches, axis=-1).reshape(N * Ho * Wo, 9 * Cin)
    w2 = p["w"].reshape(9 * Cin, Cout)
    out = matmul_scale_bias(a, w2, p["scale"], p["bias"], relu=True)
    return out.reshape(N, Ho, Wo, Cout)


def apply_head(x, p_final, fc_w, fc_scale, fc_b):
    # Fused final conv1x1+BN+ReLU -> AvgPool2d(7) -> Linear, one pallas_call.
    N, H, W, C = x.shape
    Cf = p_final["w"].shape[1]
    ncls = fc_w.shape[1]
    hw = H * W
    M = N * hw
    a = x.reshape(M, C)
    sel = (jnp.arange(N)[:, None] == (jnp.arange(M)[None, :] // hw)
           ).astype(jnp.float32) / float(hw)
    return pl.pallas_call(
        _head_kernel,
        out_shape=jax.ShapeDtypeStruct((N, ncls), jnp.float32),
        grid=(1,),
        in_specs=[
            pl.BlockSpec((M, C), lambda i: (0, 0)),
            pl.BlockSpec((C, Cf), lambda i: (0, 0)),
            pl.BlockSpec((1, Cf), lambda i: (0, 0)),
            pl.BlockSpec((1, Cf), lambda i: (0, 0)),
            pl.BlockSpec((N, M), lambda i: (0, 0)),
            pl.BlockSpec((Cf, ncls), lambda i: (0, 0)),
            pl.BlockSpec((1, ncls), lambda i: (0, 0)),
            pl.BlockSpec((1, ncls), lambda i: (0, 0)),
        ],
        out_specs=pl.BlockSpec((N, ncls), lambda i: (0, 0)),
        compiler_params=pltpu.CompilerParams(dimension_semantics=("arbitrary",)),
    )(a, p_final["w"], p_final["scale"].reshape(1, Cf),
      p_final["bias"].reshape(1, Cf), sel, fc_w,
      fc_scale.reshape(1, ncls), fc_b.reshape(1, ncls))


# ----------------------------------------------------------------------------
# Model glue: shuffle unit / full forward
# ----------------------------------------------------------------------------
def _concat_shuffle(y1, y2):
    # concat along channels + group-first ChannelShuffle(groups=2).
    c1, c2 = y1.shape[-1], y2.shape[-1]
    N, H, W, _ = y1.shape
    if c1 == c2:
        # single-pass interleave: [y1_0, y2_0, y1_1, y2_1, ...]
        return jnp.stack([y1, y2], axis=-1).reshape(N, H, W, c1 + c2)
    x = jnp.concatenate([y1, y2], axis=-1)
    C = c1 + c2
    x = x.reshape(N, H, W, 2, C // 2)
    x = jnp.swapaxes(x, 3, 4)
    return x.reshape(N, H, W, C)


def apply_shuffle_unit(x, p):
    if p["downsample"]:
        y1 = apply_dwconv3x3_block(x, p["shortcut_dconv"], stride=2)
        y1 = apply_conv1x1_block(y1, p["shortcut_conv"], relu=True)
        x2 = x
    else:
        c = x.shape[-1]
        y1 = x[..., : c // 2]
        x2 = x[..., c // 2:]
    y2 = apply_conv1x1_block(x2, p["conv1"], relu=True)
    y2 = apply_dwconv3x3_block(y2, p["dconv"], stride=2 if p["downsample"] else 1)
    y2 = apply_conv1x1_block(y2, p["conv2"], relu=True)
    # use_se=False, use_residual=False (module defaults)
    return _concat_shuffle(y1, y2)


def shufflenetv2b_forward(x_nchw, params):
    x = jnp.transpose(x_nchw, (0, 2, 3, 1)).astype(jnp.bfloat16)  # NCHW -> NHWC
    x = apply_init_conv3x3_block(x, params["init_conv"])
    x = apply_maxpool3x3_s2(x)
    for stage in params["stages"]:
        for unit in stage:
            x = apply_shuffle_unit(x, unit)
    logits = apply_head(x, params["final_conv"], params["fc_w"],
                        params["fc_scale"], params["fc_b"])
    return logits


# ----------------------------------------------------------------------------
# Deterministic parameter construction
# ----------------------------------------------------------------------------
def _kaiming_uniform(key, shape, fan_in):
    bound = math.sqrt(6.0 / fan_in)
    return jax.random.uniform(key, shape, jnp.float32, -bound, bound)


def _bn_fold(key, c, eps=1e-5):
    kg, kb, km, kv = jax.random.split(key, 4)
    gamma = jax.random.uniform(kg, (c,), jnp.float32, 0.5, 1.5)
    beta = jax.random.uniform(kb, (c,), jnp.float32, -0.1, 0.1)
    mean = jax.random.uniform(km, (c,), jnp.float32, -0.1, 0.1)
    var = jax.random.uniform(kv, (c,), jnp.float32, 0.5, 1.5)
    scale = gamma / jnp.sqrt(var + eps)
    bias = beta - mean * scale
    return scale, bias


def _make_conv1x1_params(key, cin, cout):
    kw, kb = jax.random.split(key)
    scale, bias = _bn_fold(kb, cout)
    return {"w": _kaiming_uniform(kw, (cin, cout), fan_in=cin).astype(jnp.bfloat16),
            "scale": scale, "bias": bias}


def _make_dwconv3x3_params(key, c):
    kw, kb = jax.random.split(key)
    scale, bias = _bn_fold(kb, c)
    return {"w": _kaiming_uniform(kw, (9, c), fan_in=9),   # f32 (tiny)
            "scale": scale, "bias": bias}


def _make_unit_params(key, cin, cout, downsample):
    mid = cout // 2
    y2_in = cin if downsample else cin // 2
    y2_out = cout - y2_in
    keys = jax.random.split(key, 5)
    p = {
        "downsample": downsample,
        "conv1": _make_conv1x1_params(keys[0], y2_in, mid),
        "dconv": _make_dwconv3x3_params(keys[1], mid),
        "conv2": _make_conv1x1_params(keys[2], mid, y2_out),
    }
    if downsample:
        p["shortcut_dconv"] = _make_dwconv3x3_params(keys[3], cin)
        p["shortcut_conv"] = _make_conv1x1_params(keys[4], cin, cin)
    return p


def build_shufflenetv2b_params(key, channels, init_block_channels,
                               final_block_channels, in_channels, num_classes):
    keys = iter(jax.random.split(key, 64))
    params = {}
    kw = next(keys)
    scale, bias = _bn_fold(next(keys), init_block_channels)
    params["init_conv"] = {
        "w": _kaiming_uniform(kw, (3, 3, in_channels, init_block_channels),
                              fan_in=9 * in_channels).astype(jnp.bfloat16),
        "scale": scale, "bias": bias,
    }
    cin = init_block_channels
    stages = []
    for stage_channels in channels:
        stage = []
        for j, cout in enumerate(stage_channels):
            stage.append(_make_unit_params(next(keys), cin, cout, downsample=(j == 0)))
            cin = cout
        stages.append(stage)
    params["stages"] = stages
    params["final_conv"] = _make_conv1x1_params(next(keys), cin, final_block_channels)
    cin = final_block_channels
    kfw, kfb = jax.random.split(next(keys))
    fc_bound = 1.0 / math.sqrt(cin)
    params["fc_w"] = jax.random.uniform(kfw, (cin, num_classes), jnp.float32,
                                        -fc_bound, fc_bound)
    params["fc_b"] = jax.random.uniform(kfb, (num_classes,), jnp.float32,
                                        -fc_bound, fc_bound)
    params["fc_scale"] = jnp.ones((num_classes,), jnp.float32)
    return params


# ----------------------------------------------------------------------------
if __name__ == "__main__":
    # Small ShuffleNetV2b configuration.  The module's 7x7 final avg-pool and
    # Linear(in_features=final_block_channels) imply spatial = 7 * 4 * 2**n_stages,
    # so with 2 stages the input must be 112x112.
    channels = [[16, 16], [32, 32]]
    init_block_channels = 8
    final_block_channels = 64
    in_channels = 3
    num_classes = 10
    in_size = (112, 112)
    batch = 2

    root = jax.random.PRNGKey(0)
    kparam, kx = jax.random.split(root)
    params = build_shufflenetv2b_params(kparam, channels, init_block_channels,
                                        final_block_channels, in_channels,
                                        num_classes)
    x = jax.random.normal(kx, (batch, in_channels, in_size[0], in_size[1]),
                          jnp.float32)

    logits = shufflenetv2b_forward(x, params)
    logits = jax.block_until_ready(logits)

    assert logits.shape == (batch, num_classes), logits.shape
    assert bool(jnp.all(jnp.isfinite(logits)))
    print("KERNEL_OK")
</pallas_src>

<mosaic_0001>
module attributes {stable_mosaic.version = 11 : i64} {
  func.func @_matmul_scale_bias_relu_kernel(%arg0: i32, %arg1: memref<896x27xbf16, #tpu.memory_space<vmem>>, %arg2: memref<27x8xbf16, #tpu.memory_space<vmem>>, %arg3: memref<1x8xf32, #tpu.memory_space<vmem>>, %arg4: memref<1x8xf32, #tpu.memory_space<vmem>>, %arg5: memref<896x8xbf16, #tpu.memory_space<vmem>>) attributes {dimension_semantics = [#tpu.dimension_semantics<parallel>], iteration_bounds = array<i64: 7>, scalar_prefetch = 0 : i64, scratch_operands = 0 : i64, tpu.core_type = #tpu.core_type<tc>, window_params = [{transform_indices = @transform_0, window_bounds = array<i64: 896, 27>}, {pipeline_mode = #tpu.pipeline_mode<synchronous>, transform_indices = @transform_1, window_bounds = array<i64: 27, 8>}, {pipeline_mode = #tpu.pipeline_mode<synchronous>, transform_indices = @transform_2, window_bounds = array<i64: 1, 8>}, {pipeline_mode = #tpu.pipeline_mode<synchronous>, transform_indices = @transform_3, window_bounds = array<i64: 1, 8>}, {transform_indices = @transform_4, window_bounds = array<i64: 896, 8>}]} {
    %c0 = arith.constant 0 : index
    %c0_0 = arith.constant 0 : index
    %0 = vector.load %arg1[%c0, %c0_0] : memref<896x27xbf16, #tpu.memory_space<vmem>>, vector<896x27xbf16>
    %c0_1 = arith.constant 0 : index
    %c0_2 = arith.constant 0 : index
    %1 = vector.load %arg2[%c0_1, %c0_2] : memref<27x8xbf16, #tpu.memory_space<vmem>>, vector<27x8xbf16>
    %cst = arith.constant dense<0.000000e+00> : vector<896x8xf32>
    %2 = tpu.matmul %0, %1, %cst {dimension_numbers = #tpu.dot_dimension_numbers<[1], [0], [0], [1], [0, 0, 1, 1], [], []>} : vector<896x27xbf16>, vector<27x8xbf16>, vector<896x8xf32> -> vector<896x8xf32>
    %c0_3 = arith.constant 0 : index
    %c0_4 = arith.constant 0 : index
    %3 = vector.load %arg3[%c0_3, %c0_4] : memref<1x8xf32, #tpu.memory_space<vmem>>, vector<1x8xf32>
    %4 = vector.broadcast %3 : vector<1x8xf32> to vector<896x8xf32>
    %5 = arith.mulf %2, %4 : vector<896x8xf32>
    %c0_5 = arith.constant 0 : index
    %c0_6 = arith.constant 0 : index
    %6 = vector.load %arg4[%c0_5, %c0_6] : memref<1x8xf32, #tpu.memory_space<vmem>>, vector<1x8xf32>
    %7 = vector.broadcast %6 : vector<1x8xf32> to vector<896x8xf32>
    %8 = arith.addf %5, %7 : vector<896x8xf32>
    %cst_7 = arith.constant 0.000000e+00 : f32
    %9 = vector.broadcast %cst_7 : f32 to vector<896x8xf32>
    %10 = arith.maximumf %8, %9 : vector<896x8xf32>
    %11 = arith.truncf %10 : vector<896x8xf32> to vector<896x8xbf16>
    %c0_8 = arith.constant 0 : index
    %c0_9 = arith.constant 0 : index
    %12 = vector.load %arg5[%c0_8, %c0_9] : memref<896x8xbf16, #tpu.memory_space<vmem>>, vector<896x8xbf16>
    tpu.vector_store %arg5[%c0_8, %c0_9], %11 {strides = array<i32>} : memref<896x8xbf16, #tpu.memory_space<vmem>>, vector<896x8xbf16>,
    return
  }
  func.func @transform_0(%arg0: i32) -> (i32, i32) {
    %c0_i32 = arith.constant 0 : i32
    %c0_i32_0 = arith.constant 0 : i32
    return %arg0, %c0_i32 : i32, i32
  }
  func.func @transform_1(%arg0: i32) -> (i32, i32) {
    %c0_i32 = arith.constant 0 : i32
    %c0_i32_0 = arith.constant 0 : i32
    %c0_i32_1 = arith.constant 0 : i32
    return %c0_i32, %c0_i32_0 : i32, i32
  }
  func.func @transform_2(%arg0: i32) -> (i32, i32) {
    %c0_i32 = arith.constant 0 : i32
    %c0_i32_0 = arith.constant 0 : i32
    %c0_i32_1 = arith.constant 0 : i32
    return %c0_i32, %c0_i32_0 : i32, i32
  }
  func.func @transform_3(%arg0: i32) -> (i32, i32) {
    %c0_i32 = arith.constant 0 : i32
    %c0_i32_0 = arith.constant 0 : i32
    %c0_i32_1 = arith.constant 0 : i32
    return %c0_i32, %c0_i32_0 : i32, i32
  }
  func.func @transform_4(%arg0: i32) -> (i32, i32) {
    %c0_i32 = arith.constant 0 : i32
    %c0_i32_0 = arith.constant 0 : i32
    return %arg0, %c0_i32 : i32, i32
  }
}

</mosaic_0001>

<llo_original>
// kernel: tpu_custom_call.1
$region0: #{tpu_custom_call.1}
  #allocation0 [shape = 'u32[]', space=smem, size = 0x4, offset = 0x4, fixed_abs, tag = 'smem constant byte address 0x4 - core index']
  #allocation1 [shape = 'u32[144,128]{1,0:T(1,128)}', space=vmem, size = 0x12000, scoped, tag = 'internal scratch']
  %s0 = inlined_call_operand.vmem [shape: bf16[6272,27], index: 0, kind: input, shape index: {}]
  %s1 = inlined_call_operand.vmem [shape: bf16[27,8], index: 1, kind: input, shape index: {}]
  %s2 = inlined_call_operand.vmem [shape: f32[1,8], index: 2, kind: input, shape index: {}]
  %s3 = inlined_call_operand.vmem [shape: f32[1,8], index: 3, kind: input, shape index: {}]
  %s4 = inlined_call_operand.vmem [shape: bf16[6272,8], index: 4, kind: output, shape index: {}]
  %s5 = sld [smem:[#allocation0]]
  $region49: #{tpu_custom_call.1} parent=0
    _
  %s7 = ssub.s32 1, %s5
  %s8 = scalar_select 0, %s7, %s5
  loop: start=0, step=1, limit=9
  $region2: #{tpu_custom_call.1} parent=0 // loop_pre_header
    _
  $region3: #{tpu_custom_call.1} parent=0 // loop_header
    %s10 = sphi 0, %s14
    %p11 = scmp.ge.s32.totalorder %s10, 9
    %s20 = sphi 0, %s22
    %s23 = sphi 0, %s20
    %s24 = sphi 0, %s23
    %s40 = sphi 0, %s24
    %s44 = sphi 0, %s44
    %s46 = sphi 0, %s44
    %s47 = sphi 0, %s46
    %s61 = sphi 0, %s47
    %s65 = sphi 0, %s65
    %s67 = sphi 0, %s65
    %s68 = sphi 0, %s67
    %s82 = sphi 0, %s68
    %s86 = sphi 0, %s86
    %s88 = sphi 0, %s86
    %s89 = sphi 0, %s88
    %s103 = sphi 0, %s89
    %s109 = sphi 0, %s111
    %s112 = sphi 0, %s109
    %s113 = sphi 0, %s112
    %s129 = sphi 0, %s113
  $region4: #{tpu_custom_call.1} parent=0 // loop_header_branch
    %13 = sbr.rel (%p11) target = $region8
  $region5: #{tpu_custom_call.1} parent=0 // loop_body
    %s15 = ssub.s32 %s10, 1
    %s16 = ssub.s32 %s10, 2
    %s17 = sadd.s32 %s10, 1
    %s18 = ssub.s32 %s10, %s17
    %p19 = scmp.eq.s32.totalorder %s18, 0
    %s21 = sadd.s32 %s20, 1
    %s22 = scalar_select %p19, %s20, %s21
    %p25 = pneg %p19
    %p26 = scmp.eq.s32.totalorder %s10, 6
    %p27 = por %p25, %p26
    %p28 = scmp.ne.s32.totalorder %s20, %s23
    %p29 = scmp.eq.s32.totalorder %s10, 0
    %p30 = por %p28, %p29
    %p31 = scmp.ne.s32.totalorder %s20, %s23
    %p32 = scmp.eq.s32.totalorder %s15, 6
    %p33 = por %p31, %p32
    %p34 = scmp.ne.s32.totalorder %s23, %s24
    %p35 = scmp.eq.s32.totalorder %s15, 0
    %p36 = por %p34, %p35
    %p37 = scmp.ne.s32.totalorder %s23, %s24
    %p38 = scmp.eq.s32.totalorder %s16, 6
    %p39 = por %p37, %p38
    %p41 = scmp.ne.s32.totalorder %s24, %s40
    %p42 = scmp.eq.s32.totalorder %s16, 0
    %p43 = por %p41, %p42
    %s45 = sadd.s32 %s44, 1
    %p48 = scmp.eq.s32.totalorder %s10, 6
    %p49 = scmp.ne.s32.totalorder %s44, %s46
    %p50 = scmp.eq.s32.totalorder %s10, 0
    %p51 = por %p49, %p50
    %p52 = scmp.ne.s32.totalorder %s44, %s46
    %p53 = scmp.eq.s32.totalorder %s15, 6
    %p54 = por %p52, %p53
    %p55 = scmp.ne.s32.totalorder %s46, %s47
    %p56 = scmp.eq.s32.totalorder %s15, 0
    %p57 = por %p55, %p56
    %p58 = scmp.ne.s32.totalorder %s46, %s47
    %p59 = scmp.eq.s32.totalorder %s16, 6
    %p60 = por %p58, %p59
    %p62 = scmp.ne.s32.totalorder %s47, %s61
    %p63 = scmp.eq.s32.totalorder %s16, 0
    %p64 = por %p62, %p63
    %s66 = sadd.s32 %s65, 1
    %p69 = scmp.eq.s32.totalorder %s10, 6
    %p70 = scmp.ne.s32.totalorder %s65, %s67
    %p71 = scmp.eq.s32.totalorder %s10, 0
    %p72 = por %p70, %p71
    %p73 = scmp.ne.s32.totalorder %s65, %s67
    %p74 = scmp.eq.s32.totalorder %s15, 6
    %p75 = por %p73, %p74
    %p76 = scmp.ne.s32.totalorder %s67, %s68
    %p77 = scmp.eq.s32.totalorder %s15, 0
    %p78 = por %p76, %p77
    %p79 = scmp.ne.s32.totalorder %s67, %s68
    %p80 = scmp.eq.s32.totalorder %s16, 6
    %p81 = por %p79, %p80
    %p83 = scmp.ne.s32.totalorder %s68, %s82
    %p84 = scmp.eq.s32.totalorder %s16, 0
    %p85 = por %p83, %p84
    %s87 = sadd.s32 %s86, 1
    %p90 = scmp.eq.s32.totalorder %s10, 6
    %p91 = scmp.ne.s32.totalorder %s86, %s88
    %p92 = scmp.eq.s32.totalorder %s10, 0
    %p93 = por %p91, %p92
    %p94 = scmp.ne.s32.totalorder %s86, %s88
    %p95 = scmp.eq.s32.totalorder %s15, 6
    %p96 = por %p94, %p95
    %p97 = scmp.ne.s32.totalorder %s88, %s89
    %p98 = scmp.eq.s32.totalorder %s15, 0
    %p99 = por %p97, %p98
    %p100 = scmp.ne.s32.totalorder %s88, %s89
    %p101 = scmp.eq.s32.totalorder %s16, 6
    %p102 = por %p100, %p101
    %p104 = scmp.ne.s32.totalorder %s89, %s103
    %p105 = scmp.eq.s32.totalorder %s16, 0
    %p106 = por %p104, %p105
    %s107 = ssub.s32 %s10, %s17
    %p108 = scmp.eq.s32.totalorder %s107, 0
    %s110 = sadd.s32 %s109, 1
    %s111 = scalar_select %p108, %s109, %s110
    %p114 = pneg %p108
    %p115 = scmp.eq.s32.totalorder %s10, 6
    %p116 = por %p114, %p115
    %p117 = scmp.ne.s32.totalorder %s109, %s112
    %p118 = scmp.eq.s32.totalorder %s10, 0
    %p119 = por %p117, %p118
    %p120 = scmp.ne.s32.totalorder %s109, %s112
    %p121 = scmp.eq.s32.totalorder %s15, 6
    %p122 = por %p120, %p121
    %p123 = scmp.ne.s32.totalorder %s112, %s113
    %p124 = scmp.eq.s32.totalorder %s15, 0
    %p125 = por %p123, %p124
    %p126 = scmp.ne.s32.totalorder %s112, %s113
    %p127 = scmp.eq.s32.totalorder %s16, 6
    %p128 = por %p126, %p127
    %p130 = scmp.ne.s32.totalorder %s113, %s129
    %p131 = scmp.eq.s32.totalorder %s16, 0
    %p132 = por %p130, %p131
    %p133 = scmp.le.s32.totalorder 1, %s10
    %p134 = scmp.lt.s32.totalorder %s10, 8
    %p135 = pnand %p133, %p134
    %p136 = pneg %p135
    // Predicated region
    $region9: #{tpu_custom_call.1} parent=5 // pred_check
      _
    $region10: #{tpu_custom_call.1} parent=5 // pred_check_branch
      %138 = sbr.rel (%p135) target = $region12
    $region11: #{tpu_custom_call.1} parent=5 // pred_region
      %s139 = ssub.s32 %s10, 1
      // Predicated region
      $region13: #{tpu_custom_call.1} parent=11 // pred_check
        %p140 = pneg %p57
      $region14: #{tpu_custom_call.1} parent=11 // pred_check_branch
        %142 = sbr.rel (%p140) target = $region16
      $region15: #{tpu_custom_call.1} parent=11 // pred_region
        _
      $region16: #{tpu_custom_call.1} parent=11 // pred_fallthru
        _
      // Predicated region
      $region17: #{tpu_custom_call.1} parent=11 // pred_check
        %p143 = pneg %p78
      $region18: #{tpu_custom_call.1} parent=11 // pred_check_branch
        %145 = sbr.rel (%p143) target = $region20
      $region19: #{tpu_custom_call.1} parent=11 // pred_region
        _
      $region20: #{tpu_custom_call.1} parent=11 // pred_fallthru
        _
      // Predicated region
      $region21: #{tpu_custom_call.1} parent=11 // pred_check
        %p146 = pneg %p99
      $region22: #{tpu_custom_call.1} parent=11 // pred_check_branch
        %148 = sbr.rel (%p146) target = $region24
      $region23: #{tpu_custom_call.1} parent=11 // pred_region
        _
      $region24: #{tpu_custom_call.1} parent=11 // pred_fallthru
        _
    $region12: #{tpu_custom_call.1} parent=5 // pred_fallthru
      _
    %p149 = scmp.lt.s32.totalorder %s10, 7
    // Predicated region
    $region25: #{tpu_custom_call.1} parent=5 // pred_check
      %p150 = pneg %p149
    $region26: #{tpu_custom_call.1} parent=5 // pred_check_branch
      %152 = sbr.rel (%p150) target = $region28
    $region27: #{tpu_custom_call.1} parent=5 // pred_region
      // Predicated region
      $region29: #{tpu_custom_call.1} parent=27 // pred_check
        %p153 = pneg %p30
      $region30: #{tpu_custom_call.1} parent=27 // pred_check_branch
        %155 = sbr.rel (%p153) target = $region32
      $region31: #{tpu_custom_call.1} parent=27 // pred_region
        %s156 = smul.u32 112, %s10
        %p157 = scmp.lt.s32.totalorder %s156, 783
        %s158 = scalar_select %p157, %s156, 783
        %s159 = smul.addr %s158, 4
        %s160 = scalar_lea.vmem %s0, %s159
        %s161 = smul.u32 112, %s10
      $region32: #{tpu_custom_call.1} parent=27 // pred_fallthru
        _
    $region28: #{tpu_custom_call.1} parent=5 // pred_fallthru
      _
    %p162 = scmp.le.s32.totalorder 1, %s10
    %p163 = scmp.lt.s32.totalorder %s10, 8
    %p164 = pnand %p162, %p163
    %p165 = pneg %p164
    // Predicated region
    $region33: #{tpu_custom_call.1} parent=5 // pred_check
      _
    $region34: #{tpu_custom_call.1} parent=5 // pred_check_branch
      %167 = sbr.rel (%p164) target = $region36
    $region35: #{tpu_custom_call.1} parent=5 // pred_region
      %s168 = ssub.s32 %s10, 1
      %s169 = smul.u32 112, %s15
      %p170 = scmp.lt.s32.totalorder %s169, 783
      %s171 = scalar_select %p170, %s169, 783
      %s172 = smul.addr %s171, 4
      %s173 = scalar_lea.vmem %s0, %s172
      %p174 = pneg %p36
      %p175 = pneg %p33
      %p176 = pneg %p57
      %p177 = pneg %p54
      %p178 = pneg %p78
      %p179 = pneg %p75
      %p180 = pneg %p99
      %p181 = pneg %p96
      %p182 = pneg %p125
      %p183 = pneg %p122
      %s184 = smul.u32 112, %s15
      %p185 = scmp.lt.s32.totalorder %s184, 783
      %s186 = scalar_select %p185, %s184, 783
      %s187 = smul.addr %s186, 4
      %s188 = scalar_lea.vmem %s4, %s187
      %s189 = smul.u32 112, %s15
      %p190 = scmp.lt.s32.totalorder %s189, 783
      %s191 = scalar_select %p190, %s189, 783
      %s192 = smul.addr %s191, 4
      %s193 = scalar_lea.vmem %s0, %s192
      %s194 = smul.u32 112, %s15
      %s195 = smul.u32 112, %s15
      %p196 = scmp.lt.s32.totalorder %s195, 783
      %s197 = scalar_select %p196, %s195, 783
      %s198 = smul.addr %s197, 4
      %s199 = scalar_lea.vmem %s4, %s198
      %s200 = smul.u32 112, %s15
      %v202 = vld [vmem:[%s193] sm:$0xf]
      %v203 = vld [vmem:[%s193 + $0x4] sm:$0xf]
      %v204 = vld [vmem:[%s193 + $0x8] sm:$0xf]
      %v205 = vld [vmem:[%s193 + $0xc] sm:$0xf]
      %v206 = vld [vmem:[%s193 + $0x10] sm:$0xf]
      %v207 = vld [vmem:[%s193 + $0x14] sm:$0xf]
      %v208 = vld [vmem:[%s193 + $0x18] sm:$0xf]
      %v209 = vld [vmem:[%s193 + $0x1c] sm:$0xf]
      %v210 = vld [vmem:[%s193 + $0x20] sm:$0xf]
      %v211 = vld [vmem:[%s193 + $0x24] sm:$0xf]
      %v212 = vld [vmem:[%s193 + $0x28] sm:$0xf]
      %v213 = vld [vmem:[%s193 + $0x2c] sm:$0xf]
      %v214 = vld [vmem:[%s193 + $0x30] sm:$0xf]
      %v215 = vld [vmem:[%s193 + $0x34] sm:$0xf]
      %v216 = vld [vmem:[%s193 + $0x38] sm:$0xf]
      %v217 = vld [vmem:[%s193 + $0x3c] sm:$0xf]
      %v218 = vld [vmem:[%s193 + $0x40] sm:$0xf]
      %v219 = vld [vmem:[%s193 + $0x44] sm:$0xf]
      %v220 = vld [vmem:[%s193 + $0x48] sm:$0xf]
      %v221 = vld [vmem:[%s193 + $0x4c] sm:$0xf]
      %v222 = vld [vmem:[%s193 + $0x50] sm:$0xf]
      %v223 = vld [vmem:[%s193 + $0x54] sm:$0xf]
      %v224 = vld [vmem:[%s193 + $0x58] sm:$0xf]
      %v225 = vld [vmem:[%s193 + $0x5c] sm:$0xf]
      %v226 = vld [vmem:[%s193 + $0x60] sm:$0xf]
      %v227 = vld [vmem:[%s193 + $0x64] sm:$0xf]
      %v228 = vld [vmem:[%s193 + $0x68] sm:$0xf]
      %v229 = vld [vmem:[%s193 + $0x6c] sm:$0xf]
      %v230 = vld [vmem:[%s193 + $0x70] sm:$0xf]
      %v231 = vld [vmem:[%s193 + $0x74] sm:$0xf]
      %v232 = vld [vmem:[%s193 + $0x78] sm:$0xf]
      %v233 = vld [vmem:[%s193 + $0x7c] sm:$0xf]
      %v234 = vld [vmem:[%s193 + $0x80] sm:$0xf]
      %v235 = vld [vmem:[%s193 + $0x84] sm:$0xf]
      %v236 = vld [vmem:[%s193 + $0x88] sm:$0xf]
      %v237 = vld [vmem:[%s193 + $0x8c] sm:$0xf]
      %v238 = vld [vmem:[%s193 + $0x90] sm:$0xf]
      %v239 = vld [vmem:[%s193 + $0x94] sm:$0xf]
      %v240 = vld [vmem:[%s193 + $0x98] sm:$0xf]
      %v241 = vld [vmem:[%s193 + $0x9c] sm:$0xf]
      %v242 = vld [vmem:[%s193 + $0xa0] sm:$0xf]
      %v243 = vld [vmem:[%s193 + $0xa4] sm:$0xf]
      %v244 = vld [vmem:[%s193 + $0xa8] sm:$0xf]
      %v245 = vld [vmem:[%s193 + $0xac] sm:$0xf]
      %v246 = vld [vmem:[%s193 + $0xb0] sm:$0xf]
      %v247 = vld [vmem:[%s193 + $0xb4] sm:$0xf]
      %v248 = vld [vmem:[%s193 + $0xb8] sm:$0xf]
      %v249 = vld [vmem:[%s193 + $0xbc] sm:$0xf]
      %v250 = vld [vmem:[%s193 + $0xc0] sm:$0xf]
      %v251 = vld [vmem:[%s193 + $0xc4] sm:$0xf]
      %v252 = vld [vmem:[%s193 + $0xc8] sm:$0xf]
      %v253 = vld [vmem:[%s193 + $0xcc] sm:$0xf]
      %v254 = vld [vmem:[%s193 + $0xd0] sm:$0xf]
      %v255 = vld [vmem:[%s193 + $0xd4] sm:$0xf]
      %v256 = vld [vmem:[%s193 + $0xd8] sm:$0xf]
      %v257 = vld [vmem:[%s193 + $0xdc] sm:$0xf]
      %v258 = vld [vmem:[%s193 + $0xe0] sm:$0xf]
      %v259 = vld [vmem:[%s193 + $0xe4] sm:$0xf]
      %v260 = vld [vmem:[%s193 + $0xe8] sm:$0xf]
      %v261 = vld [vmem:[%s193 + $0xec] sm:$0xf]
      %v262 = vld [vmem:[%s193 + $0xf0] sm:$0xf]
      %v263 = vld [vmem:[%s193 + $0xf4] sm:$0xf]
      %v264 = vld [vmem:[%s193 + $0xf8] sm:$0xf]
      %v265 = vld [vmem:[%s193 + $0xfc] sm:$0xf]
      %v266 = vld [vmem:[%s193 + $0x100] sm:$0xf]
      %v267 = vld [vmem:[%s193 + $0x104] sm:$0xf]
      %v268 = vld [vmem:[%s193 + $0x108] sm:$0xf]
      %v269 = vld [vmem:[%s193 + $0x10c] sm:$0xf]
      %v270 = vld [vmem:[%s193 + $0x110] sm:$0xf]
      %v271 = vld [vmem:[%s193 + $0x114] sm:$0xf]
      %v272 = vld [vmem:[%s193 + $0x118] sm:$0xf]
      %v273 = vld [vmem:[%s193 + $0x11c] sm:$0xf]
      %v274 = vld [vmem:[%s193 + $0x120] sm:$0xf]
      %v275 = vld [vmem:[%s193 + $0x124] sm:$0xf]
      %v276 = vld [vmem:[%s193 + $0x128] sm:$0xf]
      %v277 = vld [vmem:[%s193 + $0x12c] sm:$0xf]
      %v278 = vld [vmem:[%s193 + $0x130] sm:$0xf]
      %v279 = vld [vmem:[%s193 + $0x134] sm:$0xf]
      %v280 = vld [vmem:[%s193 + $0x138] sm:$0xf]
      %v281 = vld [vmem:[%s193 + $0x13c] sm:$0xf]
      %v282 = vld [vmem:[%s193 + $0x140] sm:$0xf]
      %v283 = vld [vmem:[%s193 + $0x144] sm:$0xf]
      %v284 = vld [vmem:[%s193 + $0x148] sm:$0xf]
      %v285 = vld [vmem:[%s193 + $0x14c] sm:$0xf]
      %v286 = vld [vmem:[%s193 + $0x150] sm:$0xf]
      %v287 = vld [vmem:[%s193 + $0x154] sm:$0xf]
      %v288 = vld [vmem:[%s193 + $0x158] sm:$0xf]
      %v289 = vld [vmem:[%s193 + $0x15c] sm:$0xf]
      %v290 = vld [vmem:[%s193 + $0x160] sm:$0xf]
      %v291 = vld [vmem:[%s193 + $0x164] sm:$0xf]
      %v292 = vld [vmem:[%s193 + $0x168] sm:$0xf]
      %v293 = vld [vmem:[%s193 + $0x16c] sm:$0xf]
      %v294 = vld [vmem:[%s193 + $0x170] sm:$0xf]
      %v295 = vld [vmem:[%s193 + $0x174] sm:$0xf]
      %v296 = vld [vmem:[%s193 + $0x178] sm:$0xf]
      %v297 = vld [vmem:[%s193 + $0x17c] sm:$0xf]
      %v298 = vld [vmem:[%s193 + $0x180] sm:$0xf]
      %v299 = vld [vmem:[%s193 + $0x184] sm:$0xf]
      %v300 = vld [vmem:[%s193 + $0x188] sm:$0xf]
      %v301 = vld [vmem:[%s193 + $0x18c] sm:$0xf]
      %v302 = vld [vmem:[%s193 + $0x190] sm:$0xf]
      %v303 = vld [vmem:[%s193 + $0x194] sm:$0xf]
      %v304 = vld [vmem:[%s193 + $0x198] sm:$0xf]
      %v305 = vld [vmem:[%s193 + $0x19c] sm:$0xf]
      %v306 = vld [vmem:[%s193 + $0x1a0] sm:$0xf]
      %v307 = vld [vmem:[%s193 + $0x1a4] sm:$0xf]
      %v308 = vld [vmem:[%s193 + $0x1a8] sm:$0xf]
      %v309 = vld [vmem:[%s193 + $0x1ac] sm:$0xf]
      %v310 = vld [vmem:[%s193 + $0x1b0] sm:$0xf]
      %v311 = vld [vmem:[%s193 + $0x1b4] sm:$0xf]
      %v312 = vld [vmem:[%s193 + $0x1b8] sm:$0xf]
      %v313 = vld [vmem:[%s193 + $0x1bc] sm:$0xf]
      %v314 = vld [vmem:[%s1] sm:$0xf]
      %v315 = vld [vmem:[%s1 + $0x4] sm:$0xf]
      %v316 = vld [vmem:[%s1 + $0x8] sm:$0xf]
      %v317 = vld [vmem:[%s1 + $0xc] sm:$0x3]
      %v430 = vunpack.c.l.b16 %v202
      %v431 = vunpack.c.l.b16 %v203
      %v432 = vunpack.c.l.b16 %v204
      %v433 = vunpack.c.l.b16 %v205
      %v434 = vunpack.c.l.b16 %v206
      %v435 = vunpack.c.l.b16 %v207
      %v436 = vunpack.c.l.b16 %v208
      %v437 = vunpack.c.l.b16 %v209
      %v438 = vunpack.c.l.b16 %v210
      %v439 = vunpack.c.l.b16 %v211
      %v440 = vunpack.c.l.b16 %v212
      %v441 = vunpack.c.l.b16 %v213
      %v442 = vunpack.c.l.b16 %v214
      %v443 = vunpack.c.l.b16 %v215
      %v444 = vunpack.c.l.b16 %v216
      %v445 = vunpack.c.l.b16 %v217
      %v446 = vunpack.c.l.b16 %v218
      %v447 = vunpack.c.l.b16 %v219
      %v448 = vunpack.c.l.b16 %v220
      %v449 = vunpack.c.l.b16 %v221
      %v450 = vunpack.c.l.b16 %v222
      %v451 = vunpack.c.l.b16 %v223
      %v452 = vunpack.c.l.b16 %v224
      %v453 = vunpack.c.l.b16 %v225
      %v454 = vunpack.c.l.b16 %v226
      %v455 = vunpack.c.l.b16 %v227
      %v456 = vunpack.c.l.b16 %v228
      %v457 = vunpack.c.l.b16 %v229
      %v458 = vunpack.c.l.b16 %v230
      %v459 = vunpack.c.l.b16 %v231
      %v460 = vunpack.c.l.b16 %v232
      %v461 = vunpack.c.l.b16 %v233
      %v462 = vunpack.c.l.b16 %v234
      %v463 = vunpack.c.l.b16 %v235
      %v464 = vunpack.c.l.b16 %v236
      %v465 = vunpack.c.l.b16 %v237
      %v466 = vunpack.c.l.b16 %v238
      %v467 = vunpack.c.l.b16 %v239
      %v468 = vunpack.c.l.b16 %v240
      %v469 = vunpack.c.l.b16 %v241
      %v470 = vunpack.c.l.b16 %v242
      %v471 = vunpack.c.l.b16 %v243
      %v472 = vunpack.c.l.b16 %v244
      %v473 = vunpack.c.l.b16 %v245
      %v474 = vunpack.c.l.b16 %v246
      %v475 = vunpack.c.l.b16 %v247
      %v476 = vunpack.c.l.b16 %v248
      %v477 = vunpack.c.l.b16 %v249
      %v478 = vunpack.c.l.b16 %v250
      %v479 = vunpack.c.l.b16 %v251
      %v480 = vunpack.c.l.b16 %v252
      %v481 = vunpack.c.l.b16 %v253
      %v482 = vunpack.c.l.b16 %v254
      %v483 = vunpack.c.l.b16 %v255
      %v484 = vunpack.c.l.b16 %v256
      %v485 = vunpack.c.l.b16 %v257
      %v486 = vunpack.c.l.b16 %v258
      %v487 = vunpack.c.l.b16 %v259
      %v488 = vunpack.c.l.b16 %v260
      %v489 = vunpack.c.l.b16 %v261
      %v490 = vunpack.c.l.b16 %v262
      %v491 = vunpack.c.l.b16 %v263
      %v492 = vunpack.c.l.b16 %v264
      %v493 = vunpack.c.l.b16 %v265
      %v494 = vunpack.c.l.b16 %v266
      %v495 = vunpack.c.l.b16 %v267
      %v496 = vunpack.c.l.b16 %v268
      %v497 = vunpack.c.l.b16 %v269
      %v498 = vunpack.c.l.b16 %v270
      %v499 = vunpack.c.l.b16 %v271
      %v500 = vunpack.c.l.b16 %v272
      %v501 = vunpack.c.l.b16 %v273
      %v502 = vunpack.c.l.b16 %v274
      %v503 = vunpack.c.l.b16 %v275
      %v504 = vunpack.c.l.b16 %v276
      %v505 = vunpack.c.l.b16 %v277
      %v506 = vunpack.c.l.b16 %v278
      %v507 = vunpack.c.l.b16 %v279
      %v508 = vunpack.c.l.b16 %v280
      %v509 = vunpack.c.l.b16 %v281
      %v510 = vunpack.c.l.b16 %v282
      %v511 = vunpack.c.l.b16 %v283
      %v512 = vunpack.c.l.b16 %v284
      %v513 = vunpack.c.l.b16 %v285
      %v514 = vunpack.c.l.b16 %v286
      %v515 = vunpack.c.l.b16 %v287
      %v516 = vunpack.c.l.b16 %v288
      %v517 = vunpack.c.l.b16 %v289
      %v518 = vunpack.c.l.b16 %v290
      %v519 = vunpack.c.l.b16 %v291
      %v520 = vunpack.c.l.b16 %v292
      %v521 = vunpack.c.l.b16 %v293
      %v522 = vunpack.c.l.b16 %v294
      %v523 = vunpack.c.l.b16 %v295
      %v524 = vunpack.c.l.b16 %v296
      %v525 = vunpack.c.l.b16 %v297
      %v526 = vunpack.c.l.b16 %v298
      %v527 = vunpack.c.l.b16 %v299
      %v528 = vunpack.c.l.b16 %v300
      %v529 = vunpack.c.l.b16 %v301
      %v530 = vunpack.c.l.b16 %v302
      %v531 = vunpack.c.l.b16 %v303
      %v532 = vunpack.c.l.b16 %v304
      %v533 = vunpack.c.l.b16 %v305
      %v534 = vunpack.c.l.b16 %v306
      %v535 = vunpack.c.l.b16 %v307
      %v536 = vunpack.c.l.b16 %v308
      %v537 = vunpack.c.l.b16 %v309
      %v538 = vunpack.c.l.b16 %v310
      %v539 = vunpack.c.l.b16 %v311
      %v540 = vunpack.c.l.b16 %v312
      %v541 = vunpack.c.l.b16 %v313
      %v542 = vpack.c.b16 %v431, %v430
      %v543 = vpack.c.b16 %v433, %v432
      %v544 = vpack.c.b16 %v435, %v434
      %v545 = vpack.c.b16 %v437, %v436
      %v546 = vpack.c.b16 %v439, %v438
      %v547 = vpack.c.b16 %v441, %v440
      %v548 = vpack.c.b16 %v443, %v442
      %v549 = vpack.c.b16 %v445, %v444
      %v550 = vpack.c.b16 %v447, %v446
      %v551 = vpack.c.b16 %v449, %v448
      %v552 = vpack.c.b16 %v451, %v450
      %v553 = vpack.c.b16 %v453, %v452
      %v554 = vpack.c.b16 %v455, %v454
      %v555 = vpack.c.b16 %v457, %v456
      %v556 = vpack.c.b16 %v459, %v458
      %v557 = vpack.c.b16 %v461, %v460
      %v558 = vpack.c.b16 %v463, %v462
      %v559 = vpack.c.b16 %v465, %v464
      %v560 = vpack.c.b16 %v467, %v466
      %v561 = vpack.c.b16 %v469, %v468
      %v562 = vpack.c.b16 %v471, %v470
      %v563 = vpack.c.b16 %v473, %v472
      %v564 = vpack.c.b16 %v475, %v474
      %v565 = vpack.c.b16 %v477, %v476
      %v566 = vpack.c.b16 %v479, %v478
      %v567 = vpack.c.b16 %v481, %v480
      %v568 = vpack.c.b16 %v483, %v482
      %v569 = vpack.c.b16 %v485, %v484
      %v570 = vpack.c.b16 %v487, %v486
      %v571 = vpack.c.b16 %v489, %v488
      %v572 = vpack.c.b16 %v491, %v490
      %v573 = vpack.c.b16 %v493, %v492
      %v574 = vpack.c.b16 %v495, %v494
      %v575 = vpack.c.b16 %v497, %v496
      %v576 = vpack.c.b16 %v499, %v498
      %v577 = vpack.c.b16 %v501, %v500
      %v578 = vpack.c.b16 %v503, %v502
      %v579 = vpack.c.b16 %v505, %v504
      %v580 = vpack.c.b16 %v507, %v506
      %v581 = vpack.c.b16 %v509, %v508
      %v582 = vpack.c.b16 %v511, %v510
      %v583 = vpack.c.b16 %v513, %v512
      %v584 = vpack.c.b16 %v515, %v514
      %v585 = vpack.c.b16 %v517, %v516
      %v586 = vpack.c.b16 %v519, %v518
      %v587 = vpack.c.b16 %v521, %v520
      %v588 = vpack.c.b16 %v523, %v522
      %v589 = vpack.c.b16 %v525, %v524
      %v590 = vpack.c.b16 %v527, %v526
      %v591 = vpack.c.b16 %v529, %v528
      %v592 = vpack.c.b16 %v531, %v530
      %v593 = vpack.c.b16 %v533, %v532
      %v594 = vpack.c.b16 %v535, %v534
      %v595 = vpack.c.b16 %v537, %v536
      %v596 = vpack.c.b16 %v539, %v538
      %v597 = vpack.c.b16 %v541, %v540
      %v602 = vunpack.c.l.b16 %v314
      %v603 = vunpack.c.l.b16 %v315
      %v604 = vunpack.c.l.b16 %v316
      %v605 = vunpack.c.l.b16 %v317
      %v606 = vpack.c.b16 %v603, %v602
      %v607 = vpack.c.b16 %v605, %v604
      %vm609 = vcmask 220160
      %v611 = vsel %vm609, %v542, 0
      %v614 = vsel %vm609, %v543, 0
      %v617 = vsel %vm609, %v544, 0
      %v620 = vsel %vm609, %v545, 0
      %v623 = vsel %vm609, %v546, 0
      %v626 = vsel %vm609, %v547, 0
      %v629 = vsel %vm609, %v548, 0
      %v632 = vsel %vm609, %v549, 0
      %v635 = vsel %vm609, %v550, 0
      %v638 = vsel %vm609, %v551, 0
      %v641 = vsel %vm609, %v552, 0
      %v644 = vsel %vm609, %v553, 0
      %v647 = vsel %vm609, %v554, 0
      %v650 = vsel %vm609, %v555, 0
      %v653 = vsel %vm609, %v556, 0
      %v656 = vsel %vm609, %v557, 0
      %v659 = vsel %vm609, %v558, 0
      %v662 = vsel %vm609, %v559, 0
      %v665 = vsel %vm609, %v560, 0
      %v668 = vsel %vm609, %v561, 0
      %v671 = vsel %vm609, %v562, 0
      %v674 = vsel %vm609, %v563, 0
      %v677 = vsel %vm609, %v564, 0
      %v680 = vsel %vm609, %v565, 0
      %v683 = vsel %vm609, %v566, 0
      %v686 = vsel %vm609, %v567, 0
      %v689 = vsel %vm609, %v568, 0
      %v692 = vsel %vm609, %v569, 0
      %v695 = vsel %vm609, %v570, 0
      %v698 = vsel %vm609, %v571, 0
      %v701 = vsel %vm609, %v572, 0
      %v704 = vsel %vm609, %v573, 0
      %v707 = vsel %vm609, %v574, 0
      %v710 = vsel %vm609, %v575, 0
      %v713 = vsel %vm609, %v576, 0
      %v716 = vsel %vm609, %v577, 0
      %v719 = vsel %vm609, %v578, 0
      %v722 = vsel %vm609, %v579, 0
      %v725 = vsel %vm609, %v580, 0
      %v728 = vsel %vm609, %v581, 0
      %v731 = vsel %vm609, %v582, 0
      %v734 = vsel %vm609, %v583, 0
      %v737 = vsel %vm609, %v584, 0
      %v740 = vsel %vm609, %v585, 0
      %v743 = vsel %vm609, %v586, 0
      %v746 = vsel %vm609, %v587, 0
      %v749 = vsel %vm609, %v588, 0
      %v752 = vsel %vm609, %v589, 0
      %v755 = vsel %vm609, %v590, 0
      %v758 = vsel %vm609, %v591, 0
      %v761 = vsel %vm609, %v592, 0
      %v764 = vsel %vm609, %v593, 0
      %v767 = vsel %vm609, %v594, 0
      %v770 = vsel %vm609, %v595, 0
      %v773 = vsel %vm609, %v596, 0
      %v776 = vsel %vm609, %v597, 0
      %vm778 = vcmask 1044480
      %vm779 = vcmask 1045504
      %v780 = vsel %vm778, 4294967295, 65535
      %v781 = vsel %vm779, %v780, 0
      %v783 = vand.u32 %v607, %v781
      %785 = vmatprep.subr.bf16.mxu0 0
      %786 = vmatpush1.bf16.msra.mxu0 %v606
      %787 = vmatprep.subr.bf16.mxu0 0
      %788 = vmatpush1.bf16.msra.mxu0 %v783
      %789 = vmatprep.subr.bf16.mxu0 0
      %790 = vmatpush1.bf16.msra.mxu0 0
      %791 = vmatprep.subr.bf16.mxu0 0
      %792 = vmatpush1.bf16.msra.mxu0 0
      %793 = vmatprep.subr.bf16.mxu0 0
      %794 = vmatpush1.bf16.msra.mxu0 0
      %795 = vmatprep.subr.bf16.mxu0 0
      %796 = vmatpush1.bf16.msra.mxu0 0
      %797 = vmatprep.subr.bf16.mxu0 0
      %798 = vmatpush1.bf16.msra.mxu0 0
      %799 = vmatprep.subr.bf16.mxu0 0
      %800 = vmatpush1.bf16.msra.mxu0 0
      %801 = vmatprep.subr.bf16.mxu0 0
      %802 = vmatpush1.bf16.msra.mxu0 0
      %803 = vmatprep.subr.bf16.mxu0 0
      %804 = vmatpush1.bf16.msra.mxu0 0
      %805 = vmatprep.subr.bf16.mxu0 0
      %806 = vmatpush1.bf16.msra.mxu0 0
      %807 = vmatprep.subr.bf16.mxu0 0
      %808 = vmatpush1.bf16.msra.mxu0 0
      %809 = vmatprep.subr.bf16.mxu0 0
      %810 = vmatpush1.bf16.msra.mxu0 0
      %811 = vmatprep.subr.bf16.mxu0 0
      %812 = vmatpush1.bf16.msra.mxu0 0
      %813 = vmatprep.subr.bf16.mxu0 0
      %814 = vmatpush1.bf16.msra.mxu0 0
      %815 = vmatprep.subr.bf16.mxu0 0
      %816 = vmatpush1.bf16.msra.mxu0 0
      %817 = vmatprep.mubr.bf16.mxu0 0
      %818 = vmatmul.mubr.bf16.gmra.mrb[0].mxu0 %v611
      %v819 = vpop.f32.mrb[0].mxu0
      %v820 = vadd.f32 0.0, %v819
      %v821 = vpop.f32.mrb[0].mxu0
      %v822 = vpop.f32.mrb[0].mxu0
      %v823 = vadd.f32 0.0, %v822
      %v824 = vpop.f32.mrb[0].mxu0
      %825 = vmatprep.mubr.bf16.mxu0 0
      %826 = vmatmul.mubr.bf16.gmra.mrb[0].mxu0 %v614
      %v827 = vpop.f32.mrb[0].mxu0
      %v828 = vadd.f32 0.0, %v827
      %v829 = vpop.f32.mrb[0].mxu0
      %v830 = vpop.f32.mrb[0].mxu0
      %v831 = vadd.f32 0.0, %v830
      %v832 = vpop.f32.mrb[0].mxu0
      %833 = vmatprep.mubr.bf16.mxu0 0
      %834 = vmatmul.mubr.bf16.gmra.mrb[0].mxu0 %v617
      %v835 = vpop.f32.mrb[0].mxu0
      %v836 = vadd.f32 0.0, %v835
      %v837 = vpop.f32.mrb[0].mxu0
      %v838 = vpop.f32.mrb[0].mxu0
      %v839 = vadd.f32 0.0, %v838
      %v840 = vpop.f32.mrb[0].mxu0
      %841 = vmatprep.mubr.bf16.mxu0 0
      %842 = vmatmul.mubr.bf16.gmra.mrb[0].mxu0 %v620
      %v843 = vpop.f32.mrb[0].mxu0
      %v844 = vadd.f32 0.0, %v843
      %v845 = vpop.f32.mrb[0].mxu0
      %v846 = vpop.f32.mrb[0].mxu0
      %v847 = vadd.f32 0.0, %v846
      %v848 = vpop.f32.mrb[0].mxu0
      %849 = vmatprep.mubr.bf16.mxu0 0
      %850 = vmatmul.mubr.bf16.gmra.mrb[0].mxu0 %v623
      %v851 = vpop.f32.mrb[0].mxu0
      %v852 = vadd.f32 0.0, %v851
      %v853 = vpop.f32.mrb[0].mxu0
      %v854 = vpop.f32.mrb[0].mxu0
      %v855 = vadd.f32 0.0, %v854
      %v856 = vpop.f32.mrb[0].mxu0
      %857 = vmatprep.mubr.bf16.mxu0 0
      %858 = vmatmul.mubr.bf16.gmra.mrb[0].mxu0 %v626
      %v859 = vpop.f32.mrb[0].mxu0
      %v860 = vadd.f32 0.0, %v859
      %v861 = vpop.f32.mrb[0].mxu0
      %v862 = vpop.f32.mrb[0].mxu0
      %v863 = vadd.f32 0.0, %v862
      %v864 = vpop.f32.mrb[0].mxu0
      %865 = vmatprep.mubr.bf16.mxu0 0
      %866 = vmatmul.mubr.bf16.gmra.mrb[0].mxu0 %v629
      %v867 = vpop.f32.mrb[0].mxu0
      %v868 = vadd.f32 0.0, %v867
      %v869 = vpop.f32.mrb[0].mxu0
      %v870 = vpop.f32.mrb[0].mxu0
      %v871 = vadd.f32 0.0, %v870
      %v872 = vpop.f32.mrb[0].mxu0
      %873 = vmatprep.mubr.bf16.mxu0 0
      %874 = vmatmul.mubr.bf16.gmra.mrb[0].mxu0 %v632
      %v875 = vpop.f32.mrb[0].mxu0
      %v876 = vadd.f32 0.0, %v875
      %v877 = vpop.f32.mrb[0].mxu0
      %v878 = vpop.f32.mrb[0].mxu0
      %v879 = vadd.f32 0.0, %v878
      %v880 = vpop.f32.mrb[0].mxu0
      %881 = vmatprep.mubr.bf16.mxu0 0
      %882 = vmatmul.mubr.bf16.gmra.mrb[0].mxu0 %v635
      %v883 = vpop.f32.mrb[0].mxu0
      %v884 = vadd.f32 0.0, %v883
      %v885 = vpop.f32.mrb[0].mxu0
      %v886 = vpop.f32.mrb[0].mxu0
      %v887 = vadd.f32 0.0, %v886
      %v888 = vpop.f32.mrb[0].mxu0
      %889 = vmatprep.mubr.bf16.mxu0 0
      %890 = vmatmul.mubr.bf16.gmra.mrb[0].mxu0 %v638
      %v891 = vpop.f32.mrb[0].mxu0
      %v892 = vadd.f32 0.0, %v891
      %v893 = vpop.f32.mrb[0].mxu0
      %v894 = vpop.f32.mrb[0].mxu0
      %v895 = vadd.f32 0.0, %v894
      %v896 = vpop.f32.mrb[0].mxu0
      %897 = vmatprep.mubr.bf16.mxu0 0
      %898 = vmatmul.mubr.bf16.gmra.mrb[0].mxu0 %v641
      %v899 = vpop.f32.mrb[0].mxu0
      %v900 = vadd.f32 0.0, %v899
      %v901 = vpop.f32.mrb[0].mxu0
      %v902 = vpop.f32.mrb[0].mxu0
      %v903 = vadd.f32 0.0, %v902
      %v904 = vpop.f32.mrb[0].mxu0
      %905 = vmatprep.mubr.bf16.mxu0 0
      %906 = vmatmul.mubr.bf16.gmra.mrb[0].mxu0 %v644
      %v907 = vpop.f32.mrb[0].mxu0
      %v908 = vadd.f32 0.0, %v907
      %v909 = vpop.f32.mrb[0].mxu0
      %v910 = vpop.f32.mrb[0].mxu0
      %v911 = vadd.f32 0.0, %v910
      %v912 = vpop.f32.mrb[0].mxu0
      %913 = vmatprep.mubr.bf16.mxu0 0
      %914 = vmatmul.mubr.bf16.gmra.mrb[0].mxu0 %v647
      %v915 = vpop.f32.mrb[0].mxu0
      %v916 = vadd.f32 0.0, %v915
      %v917 = vpop.f32.mrb[0].mxu0
      %v918 = vpop.f32.mrb[0].mxu0
      %v919 = vadd.f32 0.0, %v918
      %v920 = vpop.f32.mrb[0].mxu0
      %921 = vmatprep.mubr.bf16.mxu0 0
      %922 = vmatmul.mubr.bf16.gmra.mrb[0].mxu0 %v650
      %v923 = vpop.f32.mrb[0].mxu0
      %v924 = vadd.f32 0.0, %v923
      %v925 = vpop.f32.mrb[0].mxu0
      %v926 = vpop.f32.mrb[0].mxu0
      %v927 = vadd.f32 0.0, %v926
      %v928 = vpop.f32.mrb[0].mxu0
      %929 = vmatprep.mubr.bf16.mxu0 0
      %930 = vmatmul.mubr.bf16.gmra.mrb[0].mxu0 %v653
      %v931 = vpop.f32.mrb[0].mxu0
      %v932 = vadd.f32 0.0, %v931
      %v933 = vpop.f32.mrb[0].mxu0
      %v934 = vpop.f32.mrb[0].mxu0
      %v935 = vadd.f32 0.0, %v934
      %v936 = vpop.f32.mrb[0].mxu0
      %937 = vmatprep.mubr.bf16.mxu0 0
      %938 = vmatmul.mubr.bf16.gmra.mrb[0].mxu0 %v656
      %v939 = vpop.f32.mrb[0].mxu0
      %v940 = vadd.f32 0.0, %v939
      %v941 = vpop.f32.mrb[0].mxu0
      %v942 = vpop.f32.mrb[0].mxu0
      %v943 = vadd.f32 0.0, %v942
      %v944 = vpop.f32.mrb[0].mxu0
      %945 = vmatprep.mubr.bf16.mxu0 0
      %946 = vmatmul.mubr.bf16.gmra.mrb[0].mxu0 %v659
      %v947 = vpop.f32.mrb[0].mxu0
      %v948 = vadd.f32 0.0, %v947
      %v949 = vpop.f32.mrb[0].mxu0
      %v950 = vpop.f32.mrb[0].mxu0
      %v951 = vadd.f32 0.0, %v950
      %v952 = vpop.f32.mrb[0].mxu0
      %953 = vmatprep.mubr.bf16.mxu0 0
      %954 = vmatmul.mubr.bf16.gmra.mrb[0].mxu0 %v662
      %v955 = vpop.f32.mrb[0].mxu0
      %v956 = vadd.f32 0.0, %v955
      %v957 = vpop.f32.mrb[0].mxu0
      %v958 = vpop.f32.mrb[0].mxu0
      %v959 = vadd.f32 0.0, %v958
      %v960 = vpop.f32.mrb[0].mxu0
      %961 = vmatprep.mubr.bf16.mxu0 0
      %962 = vmatmul.mubr.bf16.gmra.mrb[0].mxu0 %v665
      %v963 = vpop.f32.mrb[0].mxu0
      %v964 = vadd.f32 0.0, %v963
      %v965 = vpop.f32.mrb[0].mxu0
      %v966 = vpop.f32.mrb[0].mxu0
      %v967 = vadd.f32 0.0, %v966
      %v968 = vpop.f32.mrb[0].mxu0
      %969 = vmatprep.mubr.bf16.mxu0 0
      %970 = vmatmul.mubr.bf16.gmra.mrb[0].mxu0 %v668
      %v971 = vpop.f32.mrb[0].mxu0
      %v972 = vadd.f32 0.0, %v971
      %v973 = vpop.f32.mrb[0].mxu0
      %v974 = vpop.f32.mrb[0].mxu0
      %v975 = vadd.f32 0.0, %v974
      %v976 = vpop.f32.mrb[0].mxu0
      %977 = vmatprep.mubr.bf16.mxu0 0
      %978 = vmatmul.mubr.bf16.gmra.mrb[0].mxu0 %v671
      %v979 = vpop.f32.mrb[0].mxu0
      %v980 = vadd.f32 0.0, %v979
      %v981 = vpop.f32.mrb[0].mxu0
      %v982 = vpop.f32.mrb[0].mxu0
      %v983 = vadd.f32 0.0, %v982
      %v984 = vpop.f32.mrb[0].mxu0
      %985 = vmatprep.mubr.bf16.mxu0 0
      %986 = vmatmul.mubr.bf16.gmra.mrb[0].mxu0 %v674
      %v987 = vpop.f32.mrb[0].mxu0
      %v988 = vadd.f32 0.0, %v987
      %v989 = vpop.f32.mrb[0].mxu0
      %v990 = vpop.f32.mrb[0].mxu0
      %v991 = vadd.f32 0.0, %v990
      %v992 = vpop.f32.mrb[0].mxu0
      %993 = vmatprep.mubr.bf16.mxu0 0
      %994 = vmatmul.mubr.bf16.gmra.mrb[0].mxu0 %v677
      %v995 = vpop.f32.mrb[0].mxu0
      %v996 = vadd.f32 0.0, %v995
      %v997 = vpop.f32.mrb[0].mxu0
      %v998 = vpop.f32.mrb[0].mxu0
      %v999 = vadd.f32 0.0, %v998
      %v1000 = vpop.f32.mrb[0].mxu0
      %1001 = vmatprep.mubr.bf16.mxu0 0
      %1002 = vmatmul.mubr.bf16.gmra.mrb[0].mxu0 %v680
      %v1003 = vpop.f32.mrb[0].mxu0
      %v1004 = vadd.f32 0.0, %v1003
      %v1005 = vpop.f32.mrb[0].mxu0
      %v1006 = vpop.f32.mrb[0].mxu0
      %v1007 = vadd.f32 0.0, %v1006
      %v1008 = vpop.f32.mrb[0].mxu0
      %1009 = vmatprep.mubr.bf16.mxu0 0
      %1010 = vmatmul.mubr.bf16.gmra.mrb[0].mxu0 %v683
      %v1011 = vpop.f32.mrb[0].mxu0
      %v1012 = vadd.f32 0.0, %v1011
      %v1013 = vpop.f32.mrb[0].mxu0
      %v1014 = vpop.f32.mrb[0].mxu0
      %v1015 = vadd.f32 0.0, %v1014
      %v1016 = vpop.f32.mrb[0].mxu0
      %1017 = vmatprep.mubr.bf16.mxu0 0
      %1018 = vmatmul.mubr.bf16.gmra.mrb[0].mxu0 %v686
      %v1019 = vpop.f32.mrb[0].mxu0
      %v1020 = vadd.f32 0.0, %v1019
      %v1021 = vpop.f32.mrb[0].mxu0
      %v1022 = vpop.f32.mrb[0].mxu0
      %v1023 = vadd.f32 0.0, %v1022
      %v1024 = vpop.f32.mrb[0].mxu0
      %1025 = vmatprep.mubr.bf16.mxu0 0
      %1026 = vmatmul.mubr.bf16.gmra.mrb[0].mxu0 %v689
      %v1027 = vpop.f32.mrb[0].mxu0
      %v1028 = vadd.f32 0.0, %v1027
      %v1029 = vpop.f32.mrb[0].mxu0
      %v1030 = vpop.f32.mrb[0].mxu0
      %v1031 = vadd.f32 0.0, %v1030
      %v1032 = vpop.f32.mrb[0].mxu0
      %1033 = vmatprep.mubr.bf16.mxu0 0
      %1034 = vmatmul.mubr.bf16.gmra.mrb[0].mxu0 %v692
      %v1035 = vpop.f32.mrb[0].mxu0
      %v1036 = vadd.f32 0.0, %v1035
      %v1037 = vpop.f32.mrb[0].mxu0
      %v1038 = vpop.f32.mrb[0].mxu0
      %v1039 = vadd.f32 0.0, %v1038
      %v1040 = vpop.f32.mrb[0].mxu0
      %1041 = vmatprep.mubr.bf16.mxu0 0
      %1042 = vmatmul.mubr.bf16.gmra.mrb[0].mxu0 %v695
      %v1043 = vpop.f32.mrb[0].mxu0
      %v1044 = vadd.f32 0.0, %v1043
      %v1045 = vpop.f32.mrb[0].mxu0
      %v1046 = vpop.f32.mrb[0].mxu0
      %v1047 = vadd.f32 0.0, %v1046
      %v1048 = vpop.f32.mrb[0].mxu0
      %1049 = vmatprep.mubr.bf16.mxu0 0
      %1050 = vmatmul.mubr.bf16.gmra.mrb[0].mxu0 %v698
      %v1051 = vpop.f32.mrb[0].mxu0
      %v1052 = vadd.f32 0.0, %v1051
      %v1053 = vpop.f32.mrb[0].mxu0
      %v1054 = vpop.f32.mrb[0].mxu0
      %v1055 = vadd.f32 0.0, %v1054
      %v1056 = vpop.f32.mrb[0].mxu0
      %1057 = vmatprep.mubr.bf16.mxu0 0
      %1058 = vmatmul.mubr.bf16.gmra.mrb[0].mxu0 %v701
      %v1059 = vpop.f32.mrb[0].mxu0
      %v1060 = vadd.f32 0.0, %v1059
      %v1061 = vpop.f32.mrb[0].mxu0
      %v1062 = vpop.f32.mrb[0].mxu0
      %v1063 = vadd.f32 0.0, %v1062
      %v1064 = vpop.f32.mrb[0].mxu0
      %1065 = vmatprep.mubr.bf16.mxu0 0
      %1066 = vmatmul.mubr.bf16.gmra.mrb[0].mxu0 %v704
      %v1067 = vpop.f32.mrb[0].mxu0
      %v1068 = vadd.f32 0.0, %v1067
      %v1069 = vpop.f32.mrb[0].mxu0
      %v1070 = vpop.f32.mrb[0].mxu0
      %v1071 = vadd.f32 0.0, %v1070
      %v1072 = vpop.f32.mrb[0].mxu0
      %1073 = vmatprep.mubr.bf16.mxu0 0
      %1074 = vmatmul.mubr.bf16.gmra.mrb[0].mxu0 %v707
      %v1075 = vpop.f32.mrb[0].mxu0
      %v1076 = vadd.f32 0.0, %v1075
      %v1077 = vpop.f32.mrb[0].mxu0
      %v1078 = vpop.f32.mrb[0].mxu0
      %v1079 = vadd.f32 0.0, %v1078
      %v1080 = vpop.f32.mrb[0].mxu0
      %1081 = vmatprep.mubr.bf16.mxu0 0
      %1082 = vmatmul.mubr.bf16.gmra.mrb[0].mxu0 %v710
      %v1083 = vpop.f32.mrb[0].mxu0
      %v1084 = vadd.f32 0.0, %v1083
      %v1085 = vpop.f32.mrb[0].mxu0
      %v1086 = vpop.f32.mrb[0].mxu0
      %v1087 = vadd.f32 0.0, %v1086
      %v1088 = vpop.f32.mrb[0].mxu0
      %1089 = vmatprep.mubr.bf16.mxu0 0
      %1090 = vmatmul.mubr.bf16.gmra.mrb[0].mxu0 %v713
      %v1091 = vpop.f32.mrb[0].mxu0
      %v1092 = vadd.f32 0.0, %v1091
      %v1093 = vpop.f32.mrb[0].mxu0
      %v1094 = vpop.f32.mrb[0].mxu0
      %v1095 = vadd.f32 0.0, %v1094
      %v1096 = vpop.f32.mrb[0].mxu0
      %1097 = vmatprep.mubr.bf16.mxu0 0
      %1098 = vmatmul.mubr.bf16.gmra.mrb[0].mxu0 %v716
      %v1099 = vpop.f32.mrb[0].mxu0
      %v1100 = vadd.f32 0.0, %v1099
      %v1101 = vpop.f32.mrb[0].mxu0
      %v1102 = vpop.f32.mrb[0].mxu0
      %v1103 = vadd.f32 0.0, %v1102
      %v1104 = vpop.f32.mrb[0].mxu0
      %1105 = vmatprep.mubr.bf16.mxu0 0
      %1106 = vmatmul.mubr.bf16.gmra.mrb[0].mxu0 %v719
      %v1107 = vpop.f32.mrb[0].mxu0
      %v1108 = vadd.f32 0.0, %v1107
      %v1109 = vpop.f32.mrb[0].mxu0
      %v1110 = vpop.f32.mrb[0].mxu0
      %v1111 = vadd.f32 0.0, %v1110
      %v1112 = vpop.f32.mrb[0].mxu0
      %1113 = vmatprep.mubr.bf16.mxu0 0
      %1114 = vmatmul.mubr.bf16.gmra.mrb[0].mxu0 %v722
      %v1115 = vpop.f32.mrb[0].mxu0
      %v1116 = vadd.f32 0.0, %v1115
      %v1117 = vpop.f32.mrb[0].mxu0
      %v1118 = vpop.f32.mrb[0].mxu0
      %v1119 = vadd.f32 0.0, %v1118
      %v1120 = vpop.f32.mrb[0].mxu0
      %1121 = vmatprep.mubr.bf16.mxu0 0
      %1122 = vmatmul.mubr.bf16.gmra.mrb[0].mxu0 %v725
      %v1123 = vpop.f32.mrb[0].mxu0
      %v1124 = vadd.f32 0.0, %v1123
      %v1125 = vpop.f32.mrb[0].mxu0
      %v1126 = vpop.f32.mrb[0].mxu0
      %v1127 = vadd.f32 0.0, %v1126
      %v1128 = vpop.f32.mrb[0].mxu0
      %1129 = vmatprep.mubr.bf16.mxu0 0
      %1130 = vmatmul.mubr.bf16.gmra.mrb[0].mxu0 %v728
      %v1131 = vpop.f32.mrb[0].mxu0
      %v1132 = vadd.f32 0.0, %v1131
      %v1133 = vpop.f32.mrb[0].mxu0
      %v1134 = vpop.f32.mrb[0].mxu0
      %v1135 = vadd.f32 0.0, %v1134
      %v1136 = vpop.f32.mrb[0].mxu0
      %1137 = vmatprep.mubr.bf16.mxu0 0
      %1138 = vmatmul.mubr.bf16.gmra.mrb[0].mxu0 %v731
      %v1139 = vpop.f32.mrb[0].mxu0
      %v1140 = vadd.f32 0.0, %v1139
      %v1141 = vpop.f32.mrb[0].mxu0
      %v1142 = vpop.f32.mrb[0].mxu0
      %v1143 = vadd.f32 0.0, %v1142
      %v1144 = vpop.f32.mrb[0].mxu0
      %1145 = vmatprep.mubr.bf16.mxu0 0
      %1146 = vmatmul.mubr.bf16.gmra.mrb[0].mxu0 %v734
      %v1147 = vpop.f32.mrb[0].mxu0
      %v1148 = vadd.f32 0.0, %v1147
      %v1149 = vpop.f32.mrb[0].mxu0
      %v1150 = vpop.f32.mrb[0].mxu0
      %v1151 = vadd.f32 0.0, %v1150
      %v1152 = vpop.f32.mrb[0].mxu0
      %1153 = vmatprep.mubr.bf16.mxu0 0
      %1154 = vmatmul.mubr.bf16.gmra.mrb[0].mxu0 %v737
      %v1155 = vpop.f32.mrb[0].mxu0
      %v1156 = vadd.f32 0.0, %v1155
      %v1157 = vpop.f32.mrb[0].mxu0
      %v1158 = vpop.f32.mrb[0].mxu0
      %v1159 = vadd.f32 0.0, %v1158
      %v1160 = vpop.f32.mrb[0].mxu0
      %1161 = vmatprep.mubr.bf16.mxu0 0
      %1162 = vmatmul.mubr.bf16.gmra.mrb[0].mxu0 %v740
      %v1163 = vpop.f32.mrb[0].mxu0
      %v1164 = vadd.f32 0.0, %v1163
      %v1165 = vpop.f32.mrb[0].mxu0
      %v1166 = vpop.f32.mrb[0].mxu0
      %v1167 = vadd.f32 0.0, %v1166
      %v1168 = vpop.f32.mrb[0].mxu0
      %1169 = vmatprep.mubr.bf16.mxu0 0
      %1170 = vmatmul.mubr.bf16.gmra.mrb[0].mxu0 %v743
      %v1171 = vpop.f32.mrb[0].mxu0
      %v1172 = vadd.f32 0.0, %v1171
      %v1173 = vpop.f32.mrb[0].mxu0
      %v1174 = vpop.f32.mrb[0].mxu0
      %v1175 = vadd.f32 0.0, %v1174
      %v1176 = vpop.f32.mrb[0].mxu0
      %1177 = vmatprep.mubr.bf16.mxu0 0
      %1178 = vmatmul.mubr.bf16.gmra.mrb[0].mxu0 %v746
      %v1179 = vpop.f32.mrb[0].mxu0
      %v1180 = vadd.f32 0.0, %v1179
      %v1181 = vpop.f32.mrb[0].mxu0
      %v1182 = vpop.f32.mrb[0].mxu0
      %v1183 = vadd.f32 0.0, %v1182
      %v1184 = vpop.f32.mrb[0].mxu0
      %1185 = vmatprep.mubr.bf16.mxu0 0
      %1186 = vmatmul.mubr.bf16.gmra.mrb[0].mxu0 %v749
      %v1187 = vpop.f32.mrb[0].mxu0
      %v1188 = vadd.f32 0.0, %v1187
      %v1189 = vpop.f32.mrb[0].mxu0
      %v1190 = vpop.f32.mrb[0].mxu0
      %v1191 = vadd.f32 0.0, %v1190
      %v1192 = vpop.f32.mrb[0].mxu0
      %1193 = vmatprep.mubr.bf16.mxu0 0
      %1194 = vmatmul.mubr.bf16.gmra.mrb[0].mxu0 %v752
      %v1195 = vpop.f32.mrb[0].mxu0
      %v1196 = vadd.f32 0.0, %v1195
      %v1197 = vpop.f32.mrb[0].mxu0
      %v1198 = vpop.f32.mrb[0].mxu0
      %v1199 = vadd.f32 0.0, %v1198
      %v1200 = vpop.f32.mrb[0].mxu0
      %1201 = vmatprep.mubr.bf16.mxu0 0
      %1202 = vmatmul.mubr.bf16.gmra.mrb[0].mxu0 %v755
      %v1203 = vpop.f32.mrb[0].mxu0
      %v1204 = vadd.f32 0.0, %v1203
      %v1205 = vpop.f32.mrb[0].mxu0
      %v1206 = vpop.f32.mrb[0].mxu0
      %v1207 = vadd.f32 0.0, %v1206
      %v1208 = vpop.f32.mrb[0].mxu0
      %1209 = vmatprep.mubr.bf16.mxu0 0
      %1210 = vmatmul.mubr.bf16.gmra.mrb[0].mxu0 %v758
      %v1211 = vpop.f32.mrb[0].mxu0
      %v1212 = vadd.f32 0.0, %v1211
      %v1213 = vpop.f32.mrb[0].mxu0
      %v1214 = vpop.f32.mrb[0].mxu0
      %v1215 = vadd.f32 0.0, %v1214
      %v1216 = vpop.f32.mrb[0].mxu0
      %1217 = vmatprep.mubr.bf16.mxu0 0
      %1218 = vmatmul.mubr.bf16.gmra.mrb[0].mxu0 %v761
      %v1219 = vpop.f32.mrb[0].mxu0
      %v1220 = vadd.f32 0.0, %v1219
      %v1221 = vpop.f32.mrb[0].mxu0
      %v1222 = vpop.f32.mrb[0].mxu0
      %v1223 = vadd.f32 0.0, %v1222
      %v1224 = vpop.f32.mrb[0].mxu0
      %1225 = vmatprep.mubr.bf16.mxu0 0
      %1226 = vmatmul.mubr.bf16.gmra.mrb[0].mxu0 %v764
      %v1227 = vpop.f32.mrb[0].mxu0
      %v1228 = vadd.f32 0.0, %v1227
      %v1229 = vpop.f32.mrb[0].mxu0
      %v1230 = vpop.f32.mrb[0].mxu0
      %v1231 = vadd.f32 0.0, %v1230
      %v1232 = vpop.f32.mrb[0].mxu0
      %1233 = vmatprep.mubr.bf16.mxu0 0
      %1234 = vmatmul.mubr.bf16.gmra.mrb[0].mxu0 %v767
      %v1235 = vpop.f32.mrb[0].mxu0
      %v1236 = vadd.f32 0.0, %v1235
      %v1237 = vpop.f32.mrb[0].mxu0
      %v1238 = vpop.f32.mrb[0].mxu0
      %v1239 = vadd.f32 0.0, %v1238
      %v1240 = vpop.f32.mrb[0].mxu0
      %1241 = vmatprep.mubr.bf16.mxu0 0
      %1242 = vmatmul.mubr.bf16.gmra.mrb[0].mxu0 %v770
      %v1243 = vpop.f32.mrb[0].mxu0
      %v1244 = vadd.f32 0.0, %v1243
      %v1245 = vpop.f32.mrb[0].mxu0
      %v1246 = vpop.f32.mrb[0].mxu0
      %v1247 = vadd.f32 0.0, %v1246
      %v1248 = vpop.f32.mrb[0].mxu0
      %1249 = vmatprep.mubr.bf16.mxu0 0
      %1250 = vmatmul.mubr.bf16.gmra.mrb[0].mxu0 %v773
      %v1251 = vpop.f32.mrb[0].mxu0
      %v1252 = vadd.f32 0.0, %v1251
      %v1253 = vpop.f32.mrb[0].mxu0
      %v1254 = vpop.f32.mrb[0].mxu0
      %v1255 = vadd.f32 0.0, %v1254
      %v1256 = vpop.f32.mrb[0].mxu0
      %1257 = vmatprep.mubr.bf16.mxu0 0
      %1258 = vmatmul.mubr.bf16.gmra.mrb[0].mxu0 %v776
      %v1259 = vpop.f32.mrb[0].mxu0
      %v1260 = vadd.f32 0.0, %v1259
      %v1261 = vpop.f32.mrb[0].mxu0
      %v1262 = vpop.f32.mrb[0].mxu0
      %v1263 = vadd.f32 0.0, %v1262
      %v1264 = vpop.f32.mrb[0].mxu0
      %1265 = vdwg.mxu0
      %v1266 = vld [vmem:[%s2] sm:$0x1]
      %v1268 = vlaneseq
      %v1269 = vshrl.u32 %v1268, 7
      %v1270 = vsub.s32 0, %v1269
      %v1271 = vrot.slane %v1266, %v1270
      %v1273 = vmul.f32 %v820, %v1271
      %v1274 = vmul.f32 %v823, %v1271
      %v1275 = vmul.f32 %v828, %v1271
      %v1276 = vmul.f32 %v831, %v1271
      %v1277 = vmul.f32 %v836, %v1271
      %v1278 = vmul.f32 %v839, %v1271
      %v1279 = vmul.f32 %v844, %v1271
      %v1280 = vmul.f32 %v847, %v1271
      %v1281 = vmul.f32 %v852, %v1271
      %v1282 = vmul.f32 %v855, %v1271
      %v1283 = vmul.f32 %v860, %v1271
      %v1284 = vmul.f32 %v863, %v1271
      %v1285 = vmul.f32 %v868, %v1271
      %v1286 = vmul.f32 %v871, %v1271
      %v1287 = vmul.f32 %v876, %v1271
      %v1288 = vmul.f32 %v879, %v1271
      %v1289 = vmul.f32 %v884, %v1271
      %v1290 = vmul.f32 %v887, %v1271
      %v1291 = vmul.f32 %v892, %v1271
      %v1292 = vmul.f32 %v895, %v1271
      %v1293 = vmul.f32 %v900, %v1271
      %v1294 = vmul.f32 %v903, %v1271
      %v1295 = vmul.f32 %v908, %v1271
      %v1296 = vmul.f32 %v911, %v1271
      %v1297 = vmul.f32 %v916, %v1271
      %v1298 = vmul.f32 %v919, %v1271
      %v1299 = vmul.f32 %v924, %v1271
      %v1300 = vmul.f32 %v927, %v1271
      %v1301 = vmul.f32 %v932, %v1271
      %v1302 = vmul.f32 %v935, %v1271
      %v1303 = vmul.f32 %v940, %v1271
      %v1304 = vmul.f32 %v943, %v1271
      %v1305 = vmul.f32 %v948, %v1271
      %v1306 = vmul.f32 %v951, %v1271
      %v1307 = vmul.f32 %v956, %v1271
      %v1308 = vmul.f32 %v959, %v1271
      %v1309 = vmul.f32 %v964, %v1271
      %v1310 = vmul.f32 %v967, %v1271
      %v1311 = vmul.f32 %v972, %v1271
      %v1312 = vmul.f32 %v975, %v1271
      %v1313 = vmul.f32 %v980, %v1271
      %v1314 = vmul.f32 %v983, %v1271
      %v1315 = vmul.f32 %v988, %v1271
      %v1316 = vmul.f32 %v991, %v1271
      %v1317 = vmul.f32 %v996, %v1271
      %v1318 = vmul.f32 %v999, %v1271
      %v1319 = vmul.f32 %v1004, %v1271
      %v1320 = vmul.f32 %v1007, %v1271
      %v1321 = vmul.f32 %v1012, %v1271
      %v1322 = vmul.f32 %v1015, %v1271
      %v1323 = vmul.f32 %v1020, %v1271
      %v1324 = vmul.f32 %v1023, %v1271
      %v1325 = vmul.f32 %v1028, %v1271
      %v1326 = vmul.f32 %v1031, %v1271
      %v1327 = vmul.f32 %v1036, %v1271
      %v1328 = vmul.f32 %v1039, %v1271
      %v1329 = vmul.f32 %v1044, %v1271
      %v1330 = vmul.f32 %v1047, %v1271
      %v1331 = vmul.f32 %v1052, %v1271
      %v1332 = vmul.f32 %v1055, %v1271
      %v1333 = vmul.f32 %v1060, %v1271
      %v1334 = vmul.f32 %v1063, %v1271
      %v1335 = vmul.f32 %v1068, %v1271
      %v1336 = vmul.f32 %v1071, %v1271
      %v1337 = vmul.f32 %v1076, %v1271
      %v1338 = vmul.f32 %v1079, %v1271
      %v1339 = vmul.f32 %v1084, %v1271
      %v1340 = vmul.f32 %v1087, %v1271
      %v1341 = vmul.f32 %v1092, %v1271
      %v1342 = vmul.f32 %v1095, %v1271
      %v1343 = vmul.f32 %v1100, %v1271
      %v1344 = vmul.f32 %v1103, %v1271
      %v1345 = vmul.f32 %v1108, %v1271
      %v1346 = vmul.f32 %v1111, %v1271
      %v1347 = vmul.f32 %v1116, %v1271
      %v1348 = vmul.f32 %v1119, %v1271
      %v1349 = vmul.f32 %v1124, %v1271
      %v1350 = vmul.f32 %v1127, %v1271
      %v1351 = vmul.f32 %v1132, %v1271
      %v1352 = vmul.f32 %v1135, %v1271
      %v1353 = vmul.f32 %v1140, %v1271
      %v1354 = vmul.f32 %v1143, %v1271
      %v1355 = vmul.f32 %v1148, %v1271
      %v1356 = vmul.f32 %v1151, %v1271
      %v1357 = vmul.f32 %v1156, %v1271
      %v1358 = vmul.f32 %v1159, %v1271
      %v1359 = vmul.f32 %v1164, %v1271
      %v1360 = vmul.f32 %v1167, %v1271
      %v1361 = vmul.f32 %v1172, %v1271
      %v1362 = vmul.f32 %v1175, %v1271
      %v1363 = vmul.f32 %v1180, %v1271
      %v1364 = vmul.f32 %v1183, %v1271
      %v1365 = vmul.f32 %v1188, %v1271
      %v1366 = vmul.f32 %v1191, %v1271
      %v1367 = vmul.f32 %v1196, %v1271
      %v1368 = vmul.f32 %v1199, %v1271
      %v1369 = vmul.f32 %v1204, %v1271
      %v1370 = vmul.f32 %v1207, %v1271
      %v1371 = vmul.f32 %v1212, %v1271
      %v1372 = vmul.f32 %v1215, %v1271
      %v1373 = vmul.f32 %v1220, %v1271
      %v1374 = vmul.f32 %v1223, %v1271
      %v1375 = vmul.f32 %v1228, %v1271
      %v1376 = vmul.f32 %v1231, %v1271
      %v1377 = vmul.f32 %v1236, %v1271
      %v1378 = vmul.f32 %v1239, %v1271
      %v1379 = vmul.f32 %v1244, %v1271
      %v1380 = vmul.f32 %v1247, %v1271
      %v1381 = vmul.f32 %v1252, %v1271
      %v1382 = vmul.f32 %v1255, %v1271
      %v1383 = vmul.f32 %v1260, %v1271
      %v1384 = vmul.f32 %v1263, %v1271
      %v1385 = vld [vmem:[%s3] sm:$0x1]
      %v1387 = vlaneseq
      %v1388 = vshrl.u32 %v1387, 7
      %v1389 = vsub.s32 0, %v1388
      %v1390 = vrot.slane %v1385, %v1389
      %v1392 = vadd.f32 %v1273, %v1390
      %v1393 = vadd.f32 %v1274, %v1390
      %v1394 = vadd.f32 %v1275, %v1390
      %v1395 = vadd.f32 %v1276, %v1390
      %v1396 = vadd.f32 %v1277, %v1390
      %v1397 = vadd.f32 %v1278, %v1390
      %v1398 = vadd.f32 %v1279, %v1390
      %v1399 = vadd.f32 %v1280, %v1390
      %v1400 = vadd.f32 %v1281, %v1390
      %v1401 = vadd.f32 %v1282, %v1390
      %v1402 = vadd.f32 %v1283, %v1390
      %v1403 = vadd.f32 %v1284, %v1390
      %v1404 = vadd.f32 %v1285, %v1390
      %v1405 = vadd.f32 %v1286, %v1390
      %v1406 = vadd.f32 %v1287, %v1390
      %v1407 = vadd.f32 %v1288, %v1390
      %v1408 = vadd.f32 %v1289, %v1390
      %v1409 = vadd.f32 %v1290, %v1390
      %v1410 = vadd.f32 %v1291, %v1390
      %v1411 = vadd.f32 %v1292, %v1390
      %v1412 = vadd.f32 %v1293, %v1390
      %v1413 = vadd.f32 %v1294, %v1390
      %v1414 = vadd.f32 %v1295, %v1390
      %v1415 = vadd.f32 %v1296, %v1390
      %v1416 = vadd.f32 %v1297, %v1390
      %v1417 = vadd.f32 %v1298, %v1390
      %v1418 = vadd.f32 %v1299, %v1390
      %v1419 = vadd.f32 %v1300, %v1390
      %v1420 = vadd.f32 %v1301, %v1390
      %v1421 = vadd.f32 %v1302, %v1390
      %v1422 = vadd.f32 %v1303, %v1390
      %v1423 = vadd.f32 %v1304, %v1390
      %v1424 = vadd.f32 %v1305, %v1390
      %v1425 = vadd.f32 %v1306, %v1390
      %v1426 = vadd.f32 %v1307, %v1390
      %v1427 = vadd.f32 %v1308, %v1390
      %v1428 = vadd.f32 %v1309, %v1390
      %v1429 = vadd.f32 %v1310, %v1390
      %v1430 = vadd.f32 %v1311, %v1390
      %v1431 = vadd.f32 %v1312, %v1390
      %v1432 = vadd.f32 %v1313, %v1390
      %v1433 = vadd.f32 %v1314, %v1390
      %v1434 = vadd.f32 %v1315, %v1390
      %v1435 = vadd.f32 %v1316, %v1390
      %v1436 = vadd.f32 %v1317, %v1390
      %v1437 = vadd.f32 %v1318, %v1390
      %v1438 = vadd.f32 %v1319, %v1390
      %v1439 = vadd.f32 %v1320, %v1390
      %v1440 = vadd.f32 %v1321, %v1390
      %v1441 = vadd.f32 %v1322, %v1390
      %v1442 = vadd.f32 %v1323, %v1390
      %v1443 = vadd.f32 %v1324, %v1390
      %v1444 = vadd.f32 %v1325, %v1390
      %v1445 = vadd.f32 %v1326, %v1390
      %v1446 = vadd.f32 %v1327, %v1390
      %v1447 = vadd.f32 %v1328, %v1390
      %v1448 = vadd.f32 %v1329, %v1390
      %v1449 = vadd.f32 %v1330, %v1390
      %v1450 = vadd.f32 %v1331, %v1390
      %v1451 = vadd.f32 %v1332, %v1390
      %v1452 = vadd.f32 %v1333, %v1390
      %v1453 = vadd.f32 %v1334, %v1390
      %v1454 = vadd.f32 %v1335, %v1390
      %v1455 = vadd.f32 %v1336, %v1390
      %v1456 = vadd.f32 %v1337, %v1390
      %v1457 = vadd.f32 %v1338, %v1390
      %v1458 = vadd.f32 %v1339, %v1390
      %v1459 = vadd.f32 %v1340, %v1390
      %v1460 = vadd.f32 %v1341, %v1390
      %v1461 = vadd.f32 %v1342, %v1390
      %v1462 = vadd.f32 %v1343, %v1390
      %v1463 = vadd.f32 %v1344, %v1390
      %v1464 = vadd.f32 %v1345, %v1390
      %v1465 = vadd.f32 %v1346, %v1390
      %v1466 = vadd.f32 %v1347, %v1390
      %v1467 = vadd.f32 %v1348, %v1390
      %v1468 = vadd.f32 %v1349, %v1390
      %v1469 = vadd.f32 %v1350, %v1390
      %v1470 = vadd.f32 %v1351, %v1390
      %v1471 = vadd.f32 %v1352, %v1390
      %v1472 = vadd.f32 %v1353, %v1390
      %v1473 = vadd.f32 %v1354, %v1390
      %v1474 = vadd.f32 %v1355, %v1390
      %v1475 = vadd.f32 %v1356, %v1390
      %v1476 = vadd.f32 %v1357, %v1390
      %v1477 = vadd.f32 %v1358, %v1390
      %v1478 = vadd.f32 %v1359, %v1390
      %v1479 = vadd.f32 %v1360, %v1390
      %v1480 = vadd.f32 %v1361, %v1390
      %v1481 = vadd.f32 %v1362, %v1390
      %v1482 = vadd.f32 %v1363, %v1390
      %v1483 = vadd.f32 %v1364, %v1390
      %v1484 = vadd.f32 %v1365, %v1390
      %v1485 = vadd.f32 %v1366, %v1390
      %v1486 = vadd.f32 %v1367, %v1390
      %v1487 = vadd.f32 %v1368, %v1390
      %v1488 = vadd.f32 %v1369, %v1390
      %v1489 = vadd.f32 %v1370, %v1390
      %v1490 = vadd.f32 %v1371, %v1390
      %v1491 = vadd.f32 %v1372, %v1390
      %v1492 = vadd.f32 %v1373, %v1390
      %v1493 = vadd.f32 %v1374, %v1390
      %v1494 = vadd.f32 %v1375, %v1390
      %v1495 = vadd.f32 %v1376, %v1390
      %v1496 = vadd.f32 %v1377, %v1390
      %v1497 = vadd.f32 %v1378, %v1390
      %v1498 = vadd.f32 %v1379, %v1390
      %v1499 = vadd.f32 %v1380, %v1390
      %v1500 = vadd.f32 %v1381, %v1390
      %v1501 = vadd.f32 %v1382, %v1390
      %v1502 = vadd.f32 %v1383, %v1390
      %v1503 = vadd.f32 %v1384, %v1390
      %v1504 = vmax.f32 %v1392, 0.0
      %v1505 = vmax.f32 %v1393, 0.0
      %v1506 = vmax.f32 %v1394, 0.0
      %v1507 = vmax.f32 %v1395, 0.0
      %v1508 = vmax.f32 %v1396, 0.0
      %v1509 = vmax.f32 %v1397, 0.0
      %v1510 = vmax.f32 %v1398, 0.0
      %v1511 = vmax.f32 %v1399, 0.0
      %v1512 = vmax.f32 %v1400, 0.0
      %v1513 = vmax.f32 %v1401, 0.0
      %v1514 = vmax.f32 %v1402, 0.0
      %v1515 = vmax.f32 %v1403, 0.0
      %v1516 = vmax.f32 %v1404, 0.0
      %v1517 = vmax.f32 %v1405, 0.0
      %v1518 = vmax.f32 %v1406, 0.0
      %v1519 = vmax.f32 %v1407, 0.0
      %v1520 = vmax.f32 %v1408, 0.0
      %v1521 = vmax.f32 %v1409, 0.0
      %v1522 = vmax.f32 %v1410, 0.0
      %v1523 = vmax.f32 %v1411, 0.0
      %v1524 = vmax.f32 %v1412, 0.0
      %v1525 = vmax.f32 %v1413, 0.0
      %v1526 = vmax.f32 %v1414, 0.0
      %v1527 = vmax.f32 %v1415, 0.0
      %v1528 = vmax.f32 %v1416, 0.0
      %v1529 = vmax.f32 %v1417, 0.0
      %v1530 = vmax.f32 %v1418, 0.0
      %v1531 = vmax.f32 %v1419, 0.0
      %v1532 = vmax.f32 %v1420, 0.0
      %v1533 = vmax.f32 %v1421, 0.0
      %v1534 = vmax.f32 %v1422, 0.0
      %v1535 = vmax.f32 %v1423, 0.0
      %v1536 = vmax.f32 %v1424, 0.0
      %v1537 = vmax.f32 %v1425, 0.0
      %v1538 = vmax.f32 %v1426, 0.0
      %v1539 = vmax.f32 %v1427, 0.0
      %v1540 = vmax.f32 %v1428, 0.0
      %v1541 = vmax.f32 %v1429, 0.0
      %v1542 = vmax.f32 %v1430, 0.0
      %v1543 = vmax.f32 %v1431, 0.0
      %v1544 = vmax.f32 %v1432, 0.0
      %v1545 = vmax.f32 %v1433, 0.0
      %v1546 = vmax.f32 %v1434, 0.0
      %v1547 = vmax.f32 %v1435, 0.0
      %v1548 = vmax.f32 %v1436, 0.0
      %v1549 = vmax.f32 %v1437, 0.0
      %v1550 = vmax.f32 %v1438, 0.0
      %v1551 = vmax.f32 %v1439, 0.0
      %v1552 = vmax.f32 %v1440, 0.0
      %v1553 = vmax.f32 %v1441, 0.0
      %v1554 = vmax.f32 %v1442, 0.0
      %v1555 = vmax.f32 %v1443, 0.0
      %v1556 = vmax.f32 %v1444, 0.0
      %v1557 = vmax.f32 %v1445, 0.0
      %v1558 = vmax.f32 %v1446, 0.0
      %v1559 = vmax.f32 %v1447, 0.0
      %v1560 = vmax.f32 %v1448, 0.0
      %v1561 = vmax.f32 %v1449, 0.0
      %v1562 = vmax.f32 %v1450, 0.0
      %v1563 = vmax.f32 %v1451, 0.0
      %v1564 = vmax.f32 %v1452, 0.0
      %v1565 = vmax.f32 %v1453, 0.0
      %v1566 = vmax.f32 %v1454, 0.0
      %v1567 = vmax.f32 %v1455, 0.0
      %v1568 = vmax.f32 %v1456, 0.0
      %v1569 = vmax.f32 %v1457, 0.0
      %v1570 = vmax.f32 %v1458, 0.0
      %v1571 = vmax.f32 %v1459, 0.0
      %v1572 = vmax.f32 %v1460, 0.0
      %v1573 = vmax.f32 %v1461, 0.0
      %v1574 = vmax.f32 %v1462, 0.0
      %v1575 = vmax.f32 %v1463, 0.0
      %v1576 = vmax.f32 %v1464, 0.0
      %v1577 = vmax.f32 %v1465, 0.0
      %v1578 = vmax.f32 %v1466, 0.0
      %v1579 = vmax.f32 %v1467, 0.0
      %v1580 = vmax.f32 %v1468, 0.0
      %v1581 = vmax.f32 %v1469, 0.0
      %v1582 = vmax.f32 %v1470, 0.0
      %v1583 = vmax.f32 %v1471, 0.0
      %v1584 = vmax.f32 %v1472, 0.0
      %v1585 = vmax.f32 %v1473, 0.0
      %v1586 = vmax.f32 %v1474, 0.0
      %v1587 = vmax.f32 %v1475, 0.0
      %v1588 = vmax.f32 %v1476, 0.0
      %v1589 = vmax.f32 %v1477, 0.0
      %v1590 = vmax.f32 %v1478, 0.0
      %v1591 = vmax.f32 %v1479, 0.0
      %v1592 = vmax.f32 %v1480, 0.0
      %v1593 = vmax.f32 %v1481, 0.0
      %v1594 = vmax.f32 %v1482, 0.0
      %v1595 = vmax.f32 %v1483, 0.0
      %v1596 = vmax.f32 %v1484, 0.0
      %v1597 = vmax.f32 %v1485, 0.0
      %v1598 = vmax.f32 %v1486, 0.0
      %v1599 = vmax.f32 %v1487, 0.0
      %v1600 = vmax.f32 %v1488, 0.0
      %v1601 = vmax.f32 %v1489, 0.0
      %v1602 = vmax.f32 %v1490, 0.0
      %v1603 = vmax.f32 %v1491, 0.0
      %v1604 = vmax.f32 %v1492, 0.0
      %v1605 = vmax.f32 %v1493, 0.0
      %v1606 = vmax.f32 %v1494, 0.0
      %v1607 = vmax.f32 %v1495, 0.0
      %v1608 = vmax.f32 %v1496, 0.0
      %v1609 = vmax.f32 %v1497, 0.0
      %v1610 = vmax.f32 %v1498, 0.0
      %v1611 = vmax.f32 %v1499, 0.0
      %v1612 = vmax.f32 %v1500, 0.0
      %v1613 = vmax.f32 %v1501, 0.0
      %v1614 = vmax.f32 %v1502, 0.0
      %v1615 = vmax.f32 %v1503, 0.0
      %v1616 = vpack.c.bf16 %v1505, %v1504
      %v1617 = vpack.c.bf16 %v1507, %v1506
      %v1618 = vpack.c.bf16 %v1509, %v1508
      %v1619 = vpack.c.bf16 %v1511, %v1510
      %v1620 = vpack.c.bf16 %v1513, %v1512
      %v1621 = vpack.c.bf16 %v1515, %v1514
      %v1622 = vpack.c.bf16 %v1517, %v1516
      %v1623 = vpack.c.bf16 %v1519, %v1518
      %v1624 = vpack.c.bf16 %v1521, %v1520
      %v1625 = vpack.c.bf16 %v1523, %v1522
      %v1626 = vpack.c.bf16 %v1525, %v1524
      %v1627 = vpack.c.bf16 %v1527, %v1526
      %v1628 = vpack.c.bf16 %v1529, %v1528
      %v1629 = vpack.c.bf16 %v1531, %v1530
      %v1630 = vpack.c.bf16 %v1533, %v1532
      %v1631 = vpack.c.bf16 %v1535, %v1534
      %v1632 = vpack.c.bf16 %v1537, %v1536
      %v1633 = vpack.c.bf16 %v1539, %v1538
      %v1634 = vpack.c.bf16 %v1541, %v1540
      %v1635 = vpack.c.bf16 %v1543, %v1542
      %v1636 = vpack.c.bf16 %v1545, %v1544
      %v1637 = vpack.c.bf16 %v1547, %v1546
      %v1638 = vpack.c.bf16 %v1549, %v1548
      %v1639 = vpack.c.bf16 %v1551, %v1550
      %v1640 = vpack.c.bf16 %v1553, %v1552
      %v1641 = vpack.c.bf16 %v1555, %v1554
      %v1642 = vpack.c.bf16 %v1557, %v1556
      %v1643 = vpack.c.bf16 %v1559, %v1558
      %v1644 = vpack.c.bf16 %v1561, %v1560
      %v1645 = vpack.c.bf16 %v1563, %v1562
      %v1646 = vpack.c.bf16 %v1565, %v1564
      %v1647 = vpack.c.bf16 %v1567, %v1566
      %v1648 = vpack.c.bf16 %v1569, %v1568
      %v1649 = vpack.c.bf16 %v1571, %v1570
      %v1650 = vpack.c.bf16 %v1573, %v1572
      %v1651 = vpack.c.bf16 %v1575, %v1574
      %v1652 = vpack.c.bf16 %v1577, %v1576
      %v1653 = vpack.c.bf16 %v1579, %v1578
      %v1654 = vpack.c.bf16 %v1581, %v1580
      %v1655 = vpack.c.bf16 %v1583, %v1582
      %v1656 = vpack.c.bf16 %v1585, %v1584
      %v1657 = vpack.c.bf16 %v1587, %v1586
      %v1658 = vpack.c.bf16 %v1589, %v1588
      %v1659 = vpack.c.bf16 %v1591, %v1590
      %v1660 = vpack.c.bf16 %v1593, %v1592
      %v1661 = vpack.c.bf16 %v1595, %v1594
      %v1662 = vpack.c.bf16 %v1597, %v1596
      %v1663 = vpack.c.bf16 %v1599, %v1598
      %v1664 = vpack.c.bf16 %v1601, %v1600
      %v1665 = vpack.c.bf16 %v1603, %v1602
      %v1666 = vpack.c.bf16 %v1605, %v1604
      %v1667 = vpack.c.bf16 %v1607, %v1606
      %v1668 = vpack.c.bf16 %v1609, %v1608
      %v1669 = vpack.c.bf16 %v1611, %v1610
      %v1670 = vpack.c.bf16 %v1613, %v1612
      %v1671 = vpack.c.bf16 %v1615, %v1614
      %v1728 = vunpack.c.l.b16 %v1616
      %v1729 = vunpack.c.h.b16 %v1616
      %v1730 = vunpack.c.l.b16 %v1617
      %v1731 = vunpack.c.h.b16 %v1617
      %v1732 = vunpack.c.l.b16 %v1618
      %v1733 = vunpack.c.h.b16 %v1618
      %v1734 = vunpack.c.l.b16 %v1619
      %v1735 = vunpack.c.h.b16 %v1619
      %v1736 = vunpack.c.l.b16 %v1620
      %v1737 = vunpack.c.h.b16 %v1620
      %v1738 = vunpack.c.l.b16 %v1621
      %v1739 = vunpack.c.h.b16 %v1621
      %v1740 = vunpack.c.l.b16 %v1622
      %v1741 = vunpack.c.h.b16 %v1622
      %v1742 = vunpack.c.l.b16 %v1623
      %v1743 = vunpack.c.h.b16 %v1623
      %v1744 = vunpack.c.l.b16 %v1624
      %v1745 = vunpack.c.h.b16 %v1624
      %v1746 = vunpack.c.l.b16 %v1625
      %v1747 = vunpack.c.h.b16 %v1625
      %v1748 = vunpack.c.l.b16 %v1626
      %v1749 = vunpack.c.h.b16 %v1626
      %v1750 = vunpack.c.l.b16 %v1627
      %v1751 = vunpack.c.h.b16 %v1627
      %v1752 = vunpack.c.l.b16 %v1628
      %v1753 = vunpack.c.h.b16 %v1628
      %v1754 = vunpack.c.l.b16 %v1629
      %v1755 = vunpack.c.h.b16 %v1629
      %v1756 = vunpack.c.l.b16 %v1630
      %v1757 = vunpack.c.h.b16 %v1630
      %v1758 = vunpack.c.l.b16 %v1631
      %v1759 = vunpack.c.h.b16 %v1631
      %v1760 = vunpack.c.l.b16 %v1632
      %v1761 = vunpack.c.h.b16 %v1632
      %v1762 = vunpack.c.l.b16 %v1633
      %v1763 = vunpack.c.h.b16 %v1633
      %v1764 = vunpack.c.l.b16 %v1634
      %v1765 = vunpack.c.h.b16 %v1634
      %v1766 = vunpack.c.l.b16 %v1635
      %v1767 = vunpack.c.h.b16 %v1635
      %v1768 = vunpack.c.l.b16 %v1636
      %v1769 = vunpack.c.h.b16 %v1636
      %v1770 = vunpack.c.l.b16 %v1637
      %v1771 = vunpack.c.h.b16 %v1637
      %v1772 = vunpack.c.l.b16 %v1638
      %v1773 = vunpack.c.h.b16 %v1638
      %v1774 = vunpack.c.l.b16 %v1639
      %v1775 = vunpack.c.h.b16 %v1639
      %v1776 = vunpack.c.l.b16 %v1640
      %v1777 = vunpack.c.h.b16 %v1640
      %v1778 = vunpack.c.l.b16 %v1641
      %v1779 = vunpack.c.h.b16 %v1641
      %v1780 = vunpack.c.l.b16 %v1642
      %v1781 = vunpack.c.h.b16 %v1642
      %v1782 = vunpack.c.l.b16 %v1643
      %v1783 = vunpack.c.h.b16 %v1643
      %v1784 = vunpack.c.l.b16 %v1644
      %v1785 = vunpack.c.h.b16 %v1644
      %v1786 = vunpack.c.l.b16 %v1645
      %v1787 = vunpack.c.h.b16 %v1645
      %v1788 = vunpack.c.l.b16 %v1646
      %v1789 = vunpack.c.h.b16 %v1646
      %v1790 = vunpack.c.l.b16 %v1647
      %v1791 = vunpack.c.h.b16 %v1647
      %v1792 = vunpack.c.l.b16 %v1648
      %v1793 = vunpack.c.h.b16 %v1648
      %v1794 = vunpack.c.l.b16 %v1649
      %v1795 = vunpack.c.h.b16 %v1649
      %v1796 = vunpack.c.l.b16 %v1650
      %v1797 = vunpack.c.h.b16 %v1650
      %v1798 = vunpack.c.l.b16 %v1651
      %v1799 = vunpack.c.h.b16 %v1651
      %v1800 = vunpack.c.l.b16 %v1652
      %v1801 = vunpack.c.h.b16 %v1652
      %v1802 = vunpack.c.l.b16 %v1653
      %v1803 = vunpack.c.h.b16 %v1653
      %v1804 = vunpack.c.l.b16 %v1654
      %v1805 = vunpack.c.h.b16 %v1654
      %v1806 = vunpack.c.l.b16 %v1655
      %v1807 = vunpack.c.h.b16 %v1655
      %v1808 = vunpack.c.l.b16 %v1656
      %v1809 = vunpack.c.h.b16 %v1656
      %v1810 = vunpack.c.l.b16 %v1657
      %v1811 = vunpack.c.h.b16 %v1657
      %v1812 = vunpack.c.l.b16 %v1658
      %v1813 = vunpack.c.h.b16 %v1658
      %v1814 = vunpack.c.l.b16 %v1659
      %v1815 = vunpack.c.h.b16 %v1659
      %v1816 = vunpack.c.l.b16 %v1660
      %v1817 = vunpack.c.h.b16 %v1660
      %v1818 = vunpack.c.l.b16 %v1661
      %v1819 = vunpack.c.h.b16 %v1661
      %v1820 = vunpack.c.l.b16 %v1662
      %v1821 = vunpack.c.h.b16 %v1662
      %v1822 = vunpack.c.l.b16 %v1663
      %v1823 = vunpack.c.h.b16 %v1663
      %v1824 = vunpack.c.l.b16 %v1664
      %v1825 = vunpack.c.h.b16 %v1664
      %v1826 = vunpack.c.l.b16 %v1665
      %v1827 = vunpack.c.h.b16 %v1665
      %v1828 = vunpack.c.l.b16 %v1666
      %v1829 = vunpack.c.h.b16 %v1666
      %v1830 = vunpack.c.l.b16 %v1667
      %v1831 = vunpack.c.h.b16 %v1667
      %v1832 = vunpack.c.l.b16 %v1668
      %v1833 = vunpack.c.h.b16 %v1668
      %v1834 = vunpack.c.l.b16 %v1669
      %v1835 = vunpack.c.h.b16 %v1669
      %v1836 = vunpack.c.l.b16 %v1670
      %v1837 = vunpack.c.h.b16 %v1670
      %v1838 = vunpack.c.l.b16 %v1671
      %v1839 = vunpack.c.h.b16 %v1671
      %v1840 = vpack.c.b16 %v1728, %v1728
      %v1841 = vpack.c.b16 %v1729, %v1729
      %v1842 = vpack.c.b16 %v1730, %v1730
      %v1843 = vpack.c.b16 %v1731, %v1731
      %v1844 = vpack.c.b16 %v1732, %v1732
      %v1845 = vpack.c.b16 %v1733, %v1733
      %v1846 = vpack.c.b16 %v1734, %v1734
      %v1847 = vpack.c.b16 %v1735, %v1735
      %v1848 = vpack.c.b16 %v1736, %v1736
      %v1849 = vpack.c.b16 %v1737, %v1737
      %v1850 = vpack.c.b16 %v1738, %v1738
      %v1851 = vpack.c.b16 %v1739, %v1739
      %v1852 = vpack.c.b16 %v1740, %v1740
      %v1853 = vpack.c.b16 %v1741, %v1741
      %v1854 = vpack.c.b16 %v1742, %v1742
      %v1855 = vpack.c.b16 %v1743, %v1743
      %v1856 = vpack.c.b16 %v1744, %v1744
      %v1857 = vpack.c.b16 %v1745, %v1745
      %v1858 = vpack.c.b16 %v1746, %v1746
      %v1859 = vpack.c.b16 %v1747, %v1747
      %v1860 = vpack.c.b16 %v1748, %v1748
      %v1861 = vpack.c.b16 %v1749, %v1749
      %v1862 = vpack.c.b16 %v1750, %v1750
      %v1863 = vpack.c.b16 %v1751, %v1751
      %v1864 = vpack.c.b16 %v1752, %v1752
      %v1865 = vpack.c.b16 %v1753, %v1753
      %v1866 = vpack.c.b16 %v1754, %v1754
      %v1867 = vpack.c.b16 %v1755, %v1755
      %v1868 = vpack.c.b16 %v1756, %v1756
      %v1869 = vpack.c.b16 %v1757, %v1757
      %v1870 = vpack.c.b16 %v1758, %v1758
      %v1871 = vpack.c.b16 %v1759, %v1759
      %v1872 = vpack.c.b16 %v1760, %v1760
      %v1873 = vpack.c.b16 %v1761, %v1761
      %v1874 = vpack.c.b16 %v1762, %v1762
      %v1875 = vpack.c.b16 %v1763, %v1763
      %v1876 = vpack.c.b16 %v1764, %v1764
      %v1877 = vpack.c.b16 %v1765, %v1765
      %v1878 = vpack.c.b16 %v1766, %v1766
      %v1879 = vpack.c.b16 %v1767, %v1767
      %v1880 = vpack.c.b16 %v1768, %v1768
      %v1881 = vpack.c.b16 %v1769, %v1769
      %v1882 = vpack.c.b16 %v1770, %v1770
      %v1883 = vpack.c.b16 %v1771, %v1771
      %v1884 = vpack.c.b16 %v1772, %v1772
      %v1885 = vpack.c.b16 %v1773, %v1773
      %v1886 = vpack.c.b16 %v1774, %v1774
      %v1887 = vpack.c.b16 %v1775, %v1775
      %v1888 = vpack.c.b16 %v1776, %v1776
      %v1889 = vpack.c.b16 %v1777, %v1777
      %v1890 = vpack.c.b16 %v1778, %v1778
      %v1891 = vpack.c.b16 %v1779, %v1779
      %v1892 = vpack.c.b16 %v1780, %v1780
      %v1893 = vpack.c.b16 %v1781, %v1781
      %v1894 = vpack.c.b16 %v1782, %v1782
      %v1895 = vpack.c.b16 %v1783, %v1783
      %v1896 = vpack.c.b16 %v1784, %v1784
      %v1897 = vpack.c.b16 %v1785, %v1785
      %v1898 = vpack.c.b16 %v1786, %v1786
      %v1899 = vpack.c.b16 %v1787, %v1787
      %v1900 = vpack.c.b16 %v1788, %v1788
      %v1901 = vpack.c.b16 %v1789, %v1789
      %v1902 = vpack.c.b16 %v1790, %v1790
      %v1903 = vpack.c.b16 %v1791, %v1791
      %v1904 = vpack.c.b16 %v1792, %v1792
      %v1905 = vpack.c.b16 %v1793, %v1793
      %v1906 = vpack.c.b16 %v1794, %v1794
      %v1907 = vpack.c.b16 %v1795, %v1795
      %v1908 = vpack.c.b16 %v1796, %v1796
      %v1909 = vpack.c.b16 %v1797, %v1797
      %v1910 = vpack.c.b16 %v1798, %v1798
      %v1911 = vpack.c.b16 %v1799, %v1799
      %v1912 = vpack.c.b16 %v1800, %v1800
      %v1913 = vpack.c.b16 %v1801, %v1801
      %v1914 = vpack.c.b16 %v1802, %v1802
      %v1915 = vpack.c.b16 %v1803, %v1803
      %v1916 = vpack.c.b16 %v1804, %v1804
      %v1917 = vpack.c.b16 %v1805, %v1805
      %v1918 = vpack.c.b16 %v1806, %v1806
      %v1919 = vpack.c.b16 %v1807, %v1807
      %v1920 = vpack.c.b16 %v1808, %v1808
      %v1921 = vpack.c.b16 %v1809, %v1809
      %v1922 = vpack.c.b16 %v1810, %v1810
      %v1923 = vpack.c.b16 %v1811, %v1811
      %v1924 = vpack.c.b16 %v1812, %v1812
      %v1925 = vpack.c.b16 %v1813, %v1813
      %v1926 = vpack.c.b16 %v1814, %v1814
      %v1927 = vpack.c.b16 %v1815, %v1815
      %v1928 = vpack.c.b16 %v1816, %v1816
      %v1929 = vpack.c.b16 %v1817, %v1817
      %v1930 = vpack.c.b16 %v1818, %v1818
      %v1931 = vpack.c.b16 %v1819, %v1819
      %v1932 = vpack.c.b16 %v1820, %v1820
      %v1933 = vpack.c.b16 %v1821, %v1821
      %v1934 = vpack.c.b16 %v1822, %v1822
      %v1935 = vpack.c.b16 %v1823, %v1823
      %v1936 = vpack.c.b16 %v1824, %v1824
      %v1937 = vpack.c.b16 %v1825, %v1825
      %v1938 = vpack.c.b16 %v1826, %v1826
      %v1939 = vpack.c.b16 %v1827, %v1827
      %v1940 = vpack.c.b16 %v1828, %v1828
      %v1941 = vpack.c.b16 %v1829, %v1829
      %v1942 = vpack.c.b16 %v1830, %v1830
      %v1943 = vpack.c.b16 %v1831, %v1831
      %v1944 = vpack.c.b16 %v1832, %v1832
      %v1945 = vpack.c.b16 %v1833, %v1833
      %v1946 = vpack.c.b16 %v1834, %v1834
      %v1947 = vpack.c.b16 %v1835, %v1835
      %v1948 = vpack.c.b16 %v1836, %v1836
      %v1949 = vpack.c.b16 %v1837, %v1837
      %v1950 = vpack.c.b16 %v1838, %v1838
      %v1951 = vpack.c.b16 %v1839, %v1839
      %vm2064 = vcmask 60416
      %2065 = vst.msk [vmem:[%s199] sm:$0xf] %vm2064, %v1840
      %2066 = vst.msk [vmem:[%s199 + $0x4] sm:$0xf] %vm2064, %v1841
      %2067 = vst.msk [vmem:[%s199 + $0x8] sm:$0xf] %vm2064, %v1842
      %2068 = vst.msk [vmem:[%s199 + $0xc] sm:$0xf] %vm2064, %v1843
      %2069 = vst.msk [vmem:[%s199 + $0x10] sm:$0xf] %vm2064, %v1844
      %2070 = vst.msk [vmem:[%s199 + $0x14] sm:$0xf] %vm2064, %v1845
      %2071 = vst.msk [vmem:[%s199 + $0x18] sm:$0xf] %vm2064, %v1846
      %2072 = vst.msk [vmem:[%s199 + $0x1c] sm:$0xf] %vm2064, %v1847
      %2073 = vst.msk [vmem:[%s199 + $0x20] sm:$0xf] %vm2064, %v1848
      %2074 = vst.msk [vmem:[%s199 + $0x24] sm:$0xf] %vm2064, %v1849
      %2075 = vst.msk [vmem:[%s199 + $0x28] sm:$0xf] %vm2064, %v1850
      %2076 = vst.msk [vmem:[%s199 + $0x2c] sm:$0xf] %vm2064, %v1851
      %2077 = vst.msk [vmem:[%s199 + $0x30] sm:$0xf] %vm2064, %v1852
      %2078 = vst.msk [vmem:[%s199 + $0x34] sm:$0xf] %vm2064, %v1853
      %2079 = vst.msk [vmem:[%s199 + $0x38] sm:$0xf] %vm2064, %v1854
      %2080 = vst.msk [vmem:[%s199 + $0x3c] sm:$0xf] %vm2064, %v1855
      %2081 = vst.msk [vmem:[%s199 + $0x40] sm:$0xf] %vm2064, %v1856
      %2082 = vst.msk [vmem:[%s199 + $0x44] sm:$0xf] %vm2064, %v1857
      %2083 = vst.msk [vmem:[%s199 + $0x48] sm:$0xf] %vm2064, %v1858
      %2084 = vst.msk [vmem:[%s199 + $0x4c] sm:$0xf] %vm2064, %v1859
      %2085 = vst.msk [vmem:[%s199 + $0x50] sm:$0xf] %vm2064, %v1860
      %2086 = vst.msk [vmem:[%s199 + $0x54] sm:$0xf] %vm2064, %v1861
      %2087 = vst.msk [vmem:[%s199 + $0x58] sm:$0xf] %vm2064, %v1862
      %2088 = vst.msk [vmem:[%s199 + $0x5c] sm:$0xf] %vm2064, %v1863
      %2089 = vst.msk [vmem:[%s199 + $0x60] sm:$0xf] %vm2064, %v1864
      %2090 = vst.msk [vmem:[%s199 + $0x64] sm:$0xf] %vm2064, %v1865
      %2091 = vst.msk [vmem:[%s199 + $0x68] sm:$0xf] %vm2064, %v1866
      %2092 = vst.msk [vmem:[%s199 + $0x6c] sm:$0xf] %vm2064, %v1867
      %2093 = vst.msk [vmem:[%s199 + $0x70] sm:$0xf] %vm2064, %v1868
      %2094 = vst.msk [vmem:[%s199 + $0x74] sm:$0xf] %vm2064, %v1869
      %2095 = vst.msk [vmem:[%s199 + $0x78] sm:$0xf] %vm2064, %v1870
      %2096 = vst.msk [vmem:[%s199 + $0x7c] sm:$0xf] %vm2064, %v1871
      %2097 = vst.msk [vmem:[%s199 + $0x80] sm:$0xf] %vm2064, %v1872
      %2098 = vst.msk [vmem:[%s199 + $0x84] sm:$0xf] %vm2064, %v1873
      %2099 = vst.msk [vmem:[%s199 + $0x88] sm:$0xf] %vm2064, %v1874
      %2100 = vst.msk [vmem:[%s199 + $0x8c] sm:$0xf] %vm2064, %v1875
      %2101 = vst.msk [vmem:[%s199 + $0x90] sm:$0xf] %vm2064, %v1876
      %2102 = vst.msk [vmem:[%s199 + $0x94] sm:$0xf] %vm2064, %v1877
      %2103 = vst.msk [vmem:[%s199 + $0x98] sm:$0xf] %vm2064, %v1878
      %2104 = vst.msk [vmem:[%s199 + $0x9c] sm:$0xf] %vm2064, %v1879
      %2105 = vst.msk [vmem:[%s199 + $0xa0] sm:$0xf] %vm2064, %v1880
      %2106 = vst.msk [vmem:[%s199 + $0xa4] sm:$0xf] %vm2064, %v1881
      %2107 = vst.msk [vmem:[%s199 + $0xa8] sm:$0xf] %vm2064, %v1882
      %2108 = vst.msk [vmem:[%s199 + $0xac] sm:$0xf] %vm2064, %v1883
      %2109 = vst.msk [vmem:[%s199 + $0xb0] sm:$0xf] %vm2064, %v1884
      %2110 = vst.msk [vmem:[%s199 + $0xb4] sm:$0xf] %vm2064, %v1885
      %2111 = vst.msk [vmem:[%s199 + $0xb8] sm:$0xf] %vm2064, %v1886
      %2112 = vst.msk [vmem:[%s199 + $0xbc] sm:$0xf] %vm2064, %v1887
      %2113 = vst.msk [vmem:[%s199 + $0xc0] sm:$0xf] %vm2064, %v1888
      %2114 = vst.msk [vmem:[%s199 + $0xc4] sm:$0xf] %vm2064, %v1889
      %2115 = vst.msk [vmem:[%s199 + $0xc8] sm:$0xf] %vm2064, %v1890
      %2116 = vst.msk [vmem:[%s199 + $0xcc] sm:$0xf] %vm2064, %v1891
      %2117 = vst.msk [vmem:[%s199 + $0xd0] sm:$0xf] %vm2064, %v1892
      %2118 = vst.msk [vmem:[%s199 + $0xd4] sm:$0xf] %vm2064, %v1893
      %2119 = vst.msk [vmem:[%s199 + $0xd8] sm:$0xf] %vm2064, %v1894
      %2120 = vst.msk [vmem:[%s199 + $0xdc] sm:$0xf] %vm2064, %v1895
      %2121 = vst.msk [vmem:[%s199 + $0xe0] sm:$0xf] %vm2064, %v1896
      %2122 = vst.msk [vmem:[%s199 + $0xe4] sm:$0xf] %vm2064, %v1897
      %2123 = vst.msk [vmem:[%s199 + $0xe8] sm:$0xf] %vm2064, %v1898
      %2124 = vst.msk [vmem:[%s199 + $0xec] sm:$0xf] %vm2064, %v1899
      %2125 = vst.msk [vmem:[%s199 + $0xf0] sm:$0xf] %vm2064, %v1900
      %2126 = vst.msk [vmem:[%s199 + $0xf4] sm:$0xf] %vm2064, %v1901
      %2127 = vst.msk [vmem:[%s199 + $0xf8] sm:$0xf] %vm2064, %v1902
      %2128 = vst.msk [vmem:[%s199 + $0xfc] sm:$0xf] %vm2064, %v1903
      %2129 = vst.msk [vmem:[%s199 + $0x100] sm:$0xf] %vm2064, %v1904
      %2130 = vst.msk [vmem:[%s199 + $0x104] sm:$0xf] %vm2064, %v1905
      %2131 = vst.msk [vmem:[%s199 + $0x108] sm:$0xf] %vm2064, %v1906
      %2132 = vst.msk [vmem:[%s199 + $0x10c] sm:$0xf] %vm2064, %v1907
      %2133 = vst.msk [vmem:[%s199 + $0x110] sm:$0xf] %vm2064, %v1908
      %2134 = vst.msk [vmem:[%s199 + $0x114] sm:$0xf] %vm2064, %v1909
      %2135 = vst.msk [vmem:[%s199 + $0x118] sm:$0xf] %vm2064, %v1910
      %2136 = vst.msk [vmem:[%s199 + $0x11c] sm:$0xf] %vm2064, %v1911
      %2137 = vst.msk [vmem:[%s199 + $0x120] sm:$0xf] %vm2064, %v1912
      %2138 = vst.msk [vmem:[%s199 + $0x124] sm:$0xf] %vm2064, %v1913
      %2139 = vst.msk [vmem:[%s199 + $0x128] sm:$0xf] %vm2064, %v1914
      %2140 = vst.msk [vmem:[%s199 + $0x12c] sm:$0xf] %vm2064, %v1915
      %2141 = vst.msk [vmem:[%s199 + $0x130] sm:$0xf] %vm2064, %v1916
      %2142 = vst.msk [vmem:[%s199 + $0x134] sm:$0xf] %vm2064, %v1917
      %2143 = vst.msk [vmem:[%s199 + $0x138] sm:$0xf] %vm2064, %v1918
      %2144 = vst.msk [vmem:[%s199 + $0x13c] sm:$0xf] %vm2064, %v1919
      %2145 = vst.msk [vmem:[%s199 + $0x140] sm:$0xf] %vm2064, %v1920
      %2146 = vst.msk [vmem:[%s199 + $0x144] sm:$0xf] %vm2064, %v1921
      %2147 = vst.msk [vmem:[%s199 + $0x148] sm:$0xf] %vm2064, %v1922
      %2148 = vst.msk [vmem:[%s199 + $0x14c] sm:$0xf] %vm2064, %v1923
      %2149 = vst.msk [vmem:[%s199 + $0x150] sm:$0xf] %vm2064, %v1924
      %2150 = vst.msk [vmem:[%s199 + $0x154] sm:$0xf] %vm2064, %v1925
      %2151 = vst.msk [vmem:[%s199 + $0x158] sm:$0xf] %vm2064, %v1926
      %2152 = vst.msk [vmem:[%s199 + $0x15c] sm:$0xf] %vm2064, %v1927
      %2153 = vst.msk [vmem:[%s199 + $0x160] sm:$0xf] %vm2064, %v1928
      %2154 = vst.msk [vmem:[%s199 + $0x164] sm:$0xf] %vm2064, %v1929
      %2155 = vst.msk [vmem:[%s199 + $0x168] sm:$0xf] %vm2064, %v1930
      %2156 = vst.msk [vmem:[%s199 + $0x16c] sm:$0xf] %vm2064, %v1931
      %2157 = vst.msk [vmem:[%s199 + $0x170] sm:$0xf] %vm2064, %v1932
      %2158 = vst.msk [vmem:[%s199 + $0x174] sm:$0xf] %vm2064, %v1933
      %2159 = vst.msk [vmem:[%s199 + $0x178] sm:$0xf] %vm2064, %v1934
      %2160 = vst.msk [vmem:[%s199 + $0x17c] sm:$0xf] %vm2064, %v1935
      %2161 = vst.msk [vmem:[%s199 + $0x180] sm:$0xf] %vm2064, %v1936
      %2162 = vst.msk [vmem:[%s199 + $0x184] sm:$0xf] %vm2064, %v1937
      %2163 = vst.msk [vmem:[%s199 + $0x188] sm:$0xf] %vm2064, %v1938
      %2164 = vst.msk [vmem:[%s199 + $0x18c] sm:$0xf] %vm2064, %v1939
      %2165 = vst.msk [vmem:[%s199 + $0x190] sm:$0xf] %vm2064, %v1940
      %2166 = vst.msk [vmem:[%s199 + $0x194] sm:$0xf] %vm2064, %v1941
      %2167 = vst.msk [vmem:[%s199 + $0x198] sm:$0xf] %vm2064, %v1942
      %2168 = vst.msk [vmem:[%s199 + $0x19c] sm:$0xf] %vm2064, %v1943
      %2169 = vst.msk [vmem:[%s199 + $0x1a0] sm:$0xf] %vm2064, %v1944
      %2170 = vst.msk [vmem:[%s199 + $0x1a4] sm:$0xf] %vm2064, %v1945
      %2171 = vst.msk [vmem:[%s199 + $0x1a8] sm:$0xf] %vm2064, %v1946
      %2172 = vst.msk [vmem:[%s199 + $0x1ac] sm:$0xf] %vm2064, %v1947
      %2173 = vst.msk [vmem:[%s199 + $0x1b0] sm:$0xf] %vm2064, %v1948
      %2174 = vst.msk [vmem:[%s199 + $0x1b4] sm:$0xf] %vm2064, %v1949
      %2175 = vst.msk [vmem:[%s199 + $0x1b8] sm:$0xf] %vm2064, %v1950
      %2176 = vst.msk [vmem:[%s199 + $0x1bc] sm:$0xf] %vm2064, %v1951
      %s2177 = smul.u32 112, %s15
      %p2178 = scmp.lt.s32.totalorder %s2177, 783
      %s2179 = scalar_select %p2178, %s2177, 783
      %s2180 = smul.addr %s2179, 4
      %s2181 = scalar_lea.vmem %s4, %s2180
      // Predicated region
      $region37: #{tpu_custom_call.1} parent=35 // pred_check
        %p2182 = pneg %p122
      $region38: #{tpu_custom_call.1} parent=35 // pred_check_branch
        %2184 = sbr.rel (%p2182) target = $region40
      $region39: #{tpu_custom_call.1} parent=35 // pred_region
        %s2185 = smul.u32 112, %s15
      $region40: #{tpu_custom_call.1} parent=35 // pred_fallthru
        _
    $region36: #{tpu_custom_call.1} parent=5 // pred_fallthru
      _
    %p2186 = scmp.le.s32.totalorder 2, %s10
    // Predicated region
    $region41: #{tpu_custom_call.1} parent=5 // pred_check
      %p2187 = pneg %p2186
    $region42: #{tpu_custom_call.1} parent=5 // pred_check_branch
      %2189 = sbr.rel (%p2187) target = $region44
    $region43: #{tpu_custom_call.1} parent=5 // pred_region
      %s2190 = ssub.s32 %s10, 2
      // Predicated region
      $region45: #{tpu_custom_call.1} parent=43 // pred_check
        %p2191 = pneg %p128
      $region46: #{tpu_custom_call.1} parent=43 // pred_check_branch
        %2193 = sbr.rel (%p2191) target = $region48
      $region47: #{tpu_custom_call.1} parent=43 // pred_region
        %s2194 = smul.u32 112, %s16
        %p2195 = scmp.lt.s32.totalorder %s2194, 783
        %s2196 = scalar_select %p2195, %s2194, 783
        %s2197 = smul.addr %s2196, 4
        %s2198 = scalar_lea.vmem %s4, %s2197
      $region48: #{tpu_custom_call.1} parent=43 // pred_fallthru
        _
    $region44: #{tpu_custom_call.1} parent=5 // pred_fallthru
      _
  $region6: #{tpu_custom_call.1} parent=0 // loop_footer
    %s14 = sadd.s32 1, %s10
  $region7: #{tpu_custom_call.1} parent=0 // loop_footer_branch
    %9 = sbr.rel target = $region3
  $region8: #{tpu_custom_call.1} parent=0 // loop_exit
    _

</llo_original>
